<compile_context>
chip_gen: v6e
topology: v6e:2x2x1
jax: 0.10.0
libtpu: 0.0.40
codegen_flags: <defaults>
</compile_context>

<pallas_src>
import math
from functools import lru_cache, partial

import jax
import jax.numpy as jnp
from jax import lax
from jax.experimental import pallas as pl
from jax.experimental.pallas import tpu as pltpu


@lru_cache(maxsize=None)
def _vmem_limit_bytes():
    """Per-generation VMEM budget: ~96 MiB on v5e/v6e (128 MiB physical),
    ~48 MiB on v7x (64 MiB physical per TensorCore)."""
    try:
        cap = int(pltpu.get_tpu_info().vmem_capacity_bytes)
    except Exception:
        cap = 128 * 1024 * 1024
    return min(cap * 3 // 4, 96 * 1024 * 1024)


# ---------------------------------------------------------------------------
# Fused multi-output linear: y_i = (x @ W_i + b_i) * scale_i
# ---------------------------------------------------------------------------
def _make_multi_linear_kernel(n_out, scales, mxu_dtype):
    def kernel(*refs):
        x = refs[0][...].astype(mxu_dtype)                    # [bn, d_in]
        for i in range(n_out):
            w = refs[1 + 2 * i][...].astype(mxu_dtype)        # [d_in, bc_i]
            b = refs[2 + 2 * i][...].astype(jnp.float32)      # [1, bc_i]
            o_ref = refs[1 + 2 * n_out + i]                   # [bn, bc_i]
            y = jnp.dot(x, w, preferred_element_type=jnp.float32) + b
            if scales[i] is not None and scales[i] != 1.0:    # fold attention scale
                y = y * scales[i]
            o_ref[...] = y.astype(o_ref.dtype)
    return kernel


def pallas_multi_linear(x, weights, biases, scales=None, *, out_dtype=None,
                        block_rows=1024, block_cols=1024, compute_dtype=None):
    """x: [N, d_in]; weights[i]: [d_in, d_out_i]; biases[i]: [d_out_i].

    All outputs are computed in one pallas_call so the activation tile is
    DMA'd once per row tile (fused QKV path).  The d_out axis is tiled when
    every output shares the same block-divisible width, so weights are never
    forced to be fully VMEM-resident for large d_model.
    """
    N, d_in = x.shape
    n_out = len(weights)
    d_outs = [w.shape[1] for w in weights]
    if scales is None:
        scales = [None] * n_out
    out_dtype = out_dtype or x.dtype
    mxu_dtype = compute_dtype if compute_dtype is not None else x.dtype

    bn = N if N <= block_rows else block_rows
    if len(set(d_outs)) == 1 and d_outs[0] > block_cols and d_outs[0] % block_cols == 0:
        ncols, bcs = d_outs[0] // block_cols, [block_cols] * n_out
    else:
        ncols, bcs = 1, list(d_outs)
    grid = (pl.cdiv(N, bn), ncols)        # x block index constant across cols -> stays resident

    in_specs = [pl.BlockSpec((bn, d_in), lambda r, c: (r, 0))]
    operands = [x]
    out_specs, out_shape = [], []
    for w, b, bc in zip(weights, biases, bcs):
        d_out = w.shape[1]
        # TODO(synk): pipeline_mode=pl.Buffered(1) on these weight/bias specs would
        # halve their VMEM double-buffer footprint (most useful on v7x).
        in_specs.append(pl.BlockSpec((d_in, bc), lambda r, c: (0, c)))
        in_specs.append(pl.BlockSpec((1, bc), lambda r, c: (0, c)))
        operands += [w, b.reshape(1, d_out)]
        out_specs.append(pl.BlockSpec((bn, bc), lambda r, c: (r, c)))
        out_shape.append(jax.ShapeDtypeStruct((N, d_out), out_dtype))

    outs = pl.pallas_call(
        _make_multi_linear_kernel(n_out, list(scales), mxu_dtype),
        grid=grid,
        in_specs=in_specs,
        out_specs=out_specs,
        out_shape=out_shape,
        compiler_params=pltpu.CompilerParams(
            dimension_semantics=("parallel", "parallel"),
            vmem_limit_bytes=_vmem_limit_bytes(),
        ),
    )(*operands)
    if not isinstance(outs, (list, tuple)):
        outs = [outs]
    return list(outs)


# ---------------------------------------------------------------------------
# Flash-style multi-head attention (no attention-weights output), S-axis tiled
# ---------------------------------------------------------------------------
def _flash_mha_kernel(q_ref, k_ref, v_ref, o_ref, m_sc, l_sc, acc_sc, *,
                      n_heads, d_k, d_v, mxu_dtype):
    si = pl.program_id(2)

    @pl.when(si == 0)
    def _init():
        m_sc[...] = jnp.full_like(m_sc, -jnp.inf)
        l_sc[...] = jnp.zeros_like(l_sc)
        acc_sc[...] = jnp.zeros_like(acc_sc)

    q = q_ref[0]                                   # [lb, H*E]   (scale already folded in)
    k = k_ref[0]                                   # [sb, H*E]
    v = v_ref[0]                                   # [sb, H*Dv]
    for h in range(n_heads):                       # unrolled at trace time
        qh = q[:, h * d_k:(h + 1) * d_k].astype(mxu_dtype)
        kh = k[:, h * d_k:(h + 1) * d_k].astype(mxu_dtype)
        vh = v[:, h * d_v:(h + 1) * d_v].astype(mxu_dtype)
        s = lax.dot_general(qh, kh, (((1,), (1,)), ((), ())),
                            preferred_element_type=jnp.float32)        # [lb, sb]
        m_prev = m_sc[h]                                                # [lb, 1]
        m_new = jnp.maximum(m_prev, jnp.max(s, axis=-1, keepdims=True))
        alpha = jnp.exp(m_prev - m_new)                                 # f32 softmax math
        p = jnp.exp(s - m_new)
        l_sc[h] = alpha * l_sc[h] + jnp.sum(p, axis=-1, keepdims=True)
        acc_sc[h] = alpha * acc_sc[h] + jnp.dot(p.astype(mxu_dtype), vh,
                                                preferred_element_type=jnp.float32)
        m_sc[h] = m_new

    @pl.when(si == pl.num_programs(2) - 1)
    def _finalize():
        for h in range(n_heads):                   # normalize AFTER the PV matmul
            inv = pl.reciprocal(l_sc[h], approx=True)                   # EUP slot
            o_ref[0, :, h * d_v:(h + 1) * d_v] = (acc_sc[h] * inv).astype(o_ref.dtype)


def pallas_flash_mha(q, k, v, *, n_heads, d_k, d_v, block_l=256, block_s=1024,
                     compute_dtype=None):
    """q: [B, L, H*E], k: [B, S, H*E], v: [B, S, H*Dv].  Returns [B, L, H*Dv]."""
    B, L, _ = q.shape
    S = k.shape[1]
    lb = L if L <= block_l else block_l
    sb = S if S <= block_s else block_s
    mxu_dtype = compute_dtype if compute_dtype is not None else q.dtype
    grid = (B, pl.cdiv(L, lb), pl.cdiv(S, sb))

    return pl.pallas_call(
        partial(_flash_mha_kernel, n_heads=n_heads, d_k=d_k, d_v=d_v,
                mxu_dtype=mxu_dtype),
        grid=grid,
        in_specs=[
            pl.BlockSpec((1, lb, n_heads * d_k), lambda b, l, s: (b, l, 0)),
            pl.BlockSpec((1, sb, n_heads * d_k), lambda b, l, s: (b, s, 0)),
            pl.BlockSpec((1, sb, n_heads * d_v), lambda b, l, s: (b, s, 0)),
        ],
        out_specs=pl.BlockSpec((1, lb, n_heads * d_v), lambda b, l, s: (b, l, 0)),
        out_shape=jax.ShapeDtypeStruct((B, L, n_heads * d_v), q.dtype),
        scratch_shapes=[
            pltpu.VMEM((n_heads, lb, 1), jnp.float32),    # running max
            pltpu.VMEM((n_heads, lb, 1), jnp.float32),    # running denom
            pltpu.VMEM((n_heads, lb, d_v), jnp.float32),  # running PV accumulator
        ],
        compiler_params=pltpu.CompilerParams(
            dimension_semantics=("parallel", "parallel", "arbitrary"),
            vmem_limit_bytes=_vmem_limit_bytes(),
        ),
    )(q, k, v)


# ---------------------------------------------------------------------------
# Full-S multi-head attention that also returns the attention weights
# ---------------------------------------------------------------------------
def _mha_attn_kernel(q_ref, k_ref, v_ref, o_ref, a_ref, *, n_heads, d_k, d_v,
                     mxu_dtype):
    q = q_ref[0]                                   # [lb, H*E]
    k = k_ref[0]                                   # [S, H*E]
    v = v_ref[0]                                   # [S, H*Dv]
    for h in range(n_heads):
        qh = q[:, h * d_k:(h + 1) * d_k].astype(mxu_dtype)
        kh = k[:, h * d_k:(h + 1) * d_k].astype(mxu_dtype)
        vh = v[:, h * d_v:(h + 1) * d_v].astype(mxu_dtype)
        s = lax.dot_general(qh, kh, (((1,), (1,)), ((), ())),
                            preferred_element_type=jnp.float32)        # [lb, S]
        m = jnp.max(s, axis=-1, keepdims=True)
        p = jnp.exp(s - m)
        denom = jnp.sum(p, axis=-1, keepdims=True)
        attn = p / denom                           # exact division for the exported weights
        a_ref[0, h] = attn.astype(a_ref.dtype)
        pv = jnp.dot(attn.astype(mxu_dtype), vh, preferred_element_type=jnp.float32)
        o_ref[0, :, h * d_v:(h + 1) * d_v] = pv.astype(o_ref.dtype)    # per-head store


def pallas_mha_with_weights(q, k, v, *, n_heads, d_k, d_v, block_l=256,
                            compute_dtype=None, attn_dtype=jnp.float32):
    B, L, _ = q.shape
    S = k.shape[1]
    lb = L if L <= block_l else block_l
    mxu_dtype = compute_dtype if compute_dtype is not None else q.dtype
    grid = (B, pl.cdiv(L, lb))

    out, attn = pl.pallas_call(
        partial(_mha_attn_kernel, n_heads=n_heads, d_k=d_k, d_v=d_v,
                mxu_dtype=mxu_dtype),
        grid=grid,
        in_specs=[
            pl.BlockSpec((1, lb, n_heads * d_k), lambda b, l: (b, l, 0)),
            pl.BlockSpec((1, S, n_heads * d_k), lambda b, l: (b, 0, 0)),
            pl.BlockSpec((1, S, n_heads * d_v), lambda b, l: (b, 0, 0)),
        ],
        out_specs=[
            pl.BlockSpec((1, lb, n_heads * d_v), lambda b, l: (b, l, 0)),
            pl.BlockSpec((1, n_heads, lb, S), lambda b, l: (b, 0, l, 0)),
        ],
        out_shape=[
            jax.ShapeDtypeStruct((B, L, n_heads * d_v), q.dtype),
            jax.ShapeDtypeStruct((B, n_heads, L, S), attn_dtype),   # input dtype, not f32-forced
        ],
        compiler_params=pltpu.CompilerParams(
            dimension_semantics=("parallel", "parallel"),
            vmem_limit_bytes=_vmem_limit_bytes(),
        ),
    )(q, k, v)
    return out, attn


# ---------------------------------------------------------------------------
# AttentionLayer (JAX / Pallas)
# ---------------------------------------------------------------------------
def init_attention_layer_params(key, d_model, n_heads, d_keys=None, d_values=None,
                                output_size=None):
    d_keys = d_keys or d_model // n_heads
    d_values = d_values or d_model // n_heads
    out_dim = d_model if output_size is None else output_size

    ks = jax.random.split(key, 8)

    def linear_init(kw_, kb_, d_in, d_out):
        bound = 1.0 / math.sqrt(d_in)              # nn.Linear default init
        w = jax.random.uniform(kw_, (d_in, d_out), jnp.float32, -bound, bound)
        b = jax.random.uniform(kb_, (d_out,), jnp.float32, -bound, bound)
        return w, b

    return {
        "q_proj": linear_init(ks[0], ks[1], d_model, d_keys * n_heads),
        "k_proj": linear_init(ks[2], ks[3], d_model, d_keys * n_heads),
        "v_proj": linear_init(ks[4], ks[5], d_model, d_values * n_heads),
        "out_proj": linear_init(ks[6], ks[7], d_values * n_heads, out_dim),
        "n_heads": n_heads,
        "d_keys": d_keys,
        "d_values": d_values,
    }


def attention_layer_forward(params, queries, keys, values, attn_mask=None, *,
                            compute_dtype=jnp.bfloat16, return_attn=False,
                            block_rows=1024, block_l=256, block_s=1024, **_):
    """Forward of AttentionLayer with FullAttention (mask_flag=False, eval mode).

    Returns (output [B, L, d_out], attn) where attn is None unless
    return_attn=True (mirrors FullAttention(output_attention=...)).
    """
    if attn_mask is not None:
        # TODO(synk): masked attention (FullAttention mask_flag=True) not implemented.
        raise NotImplementedError("attn_mask is not supported (mask_flag=False path)")

    B, L, _ = queries.shape
    _, S, _ = keys.shape
    H = params["n_heads"]
    d_k = params["d_keys"]
    d_v = params["d_values"]
    scale = 1.0 / math.sqrt(d_k)     # folded into the Q projection epilogue (zero extra cost)

    qw, qb = params["q_proj"]
    kw, kb = params["k_proj"]
    vw, vb = params["v_proj"]
    ow, ob = params["out_proj"]

    in_dtype = queries.dtype
    if compute_dtype is not None:
        # bf16 MXU operands + bf16 intermediate activations (halves DMA/VMEM bytes);
        # accumulation, biases and softmax stay f32; final output stays in input dtype.
        qw, kw, vw, ow = (w.astype(compute_dtype) for w in (qw, kw, vw, ow))
        act_dtype = compute_dtype
    else:
        act_dtype = in_dtype

    lin = partial(pallas_multi_linear, block_rows=block_rows, compute_dtype=compute_dtype)

    # Fused projections: each distinct activation is read from HBM once per row tile.
    if (queries is keys) and (keys is values):
        q2, k2, v2 = lin(queries.reshape(B * L, -1), [qw, kw, vw], [qb, kb, vb],
                         scales=[scale, None, None], out_dtype=act_dtype)
    elif keys is values:
        (q2,) = lin(queries.reshape(B * L, -1), [qw], [qb], scales=[scale],
                    out_dtype=act_dtype)
        k2, v2 = lin(keys.reshape(B * S, -1), [kw, vw], [kb, vb], out_dtype=act_dtype)
    else:
        (q2,) = lin(queries.reshape(B * L, -1), [qw], [qb], scales=[scale],
                    out_dtype=act_dtype)
        (k2,) = lin(keys.reshape(B * S, -1), [kw], [kb], out_dtype=act_dtype)
        (v2,) = lin(values.reshape(B * S, -1), [vw], [vb], out_dtype=act_dtype)

    # Head-interleaved [B, L, H*E] layout throughout: no HBM transposes.
    q3 = q2.reshape(B, L, H * d_k)
    k3 = k2.reshape(B, S, H * d_k)
    v3 = v2.reshape(B, S, H * d_v)

    if return_attn:
        out, attn = pallas_mha_with_weights(
            q3, k3, v3, n_heads=H, d_k=d_k, d_v=d_v, block_l=block_l,
            compute_dtype=compute_dtype, attn_dtype=in_dtype)
    else:
        out = pallas_flash_mha(
            q3, k3, v3, n_heads=H, d_k=d_k, d_v=d_v, block_l=block_l,
            block_s=block_s, compute_dtype=compute_dtype)
        attn = None

    # TODO(synk): optionally fuse this output projection into the attention epilogue
    # (sum_h acc_h @ W_slice_h) to remove one [B,L,H*Dv] HBM round trip.
    (y,) = lin(out.reshape(B * L, H * d_v), [ow], [ob], out_dtype=in_dtype)
    return y.reshape(B, L, -1), attn


# ---------------------------------------------------------------------------
# Pure-JAX reference (PyTorch semantics) for a numerics sanity check
# ---------------------------------------------------------------------------
def reference_forward(params, queries, keys, values):
    H, d_k, d_v = params["n_heads"], params["d_keys"], params["d_values"]
    qw, qb = params["q_proj"]
    kw, kb = params["k_proj"]
    vw, vb = params["v_proj"]
    ow, ob = params["out_proj"]
    B, L, _ = queries.shape
    S = keys.shape[1]
    q = (queries @ qw + qb).reshape(B, L, H, d_k)
    k = (keys @ kw + kb).reshape(B, S, H, d_k)
    v = (values @ vw + vb).reshape(B, S, H, d_v)
    scores = jnp.einsum("blhe,bshe->bhls", q, k) / math.sqrt(d_k)
    attn = jax.nn.softmax(scores, axis=-1)
    out = jnp.einsum("bhls,bshd->blhd", attn, v).reshape(B, L, H * d_v)
    return out @ ow + ob, attn


# ---------------------------------------------------------------------------
# main
# ---------------------------------------------------------------------------
if __name__ == "__main__":
    B, L, S_cross, d_model, n_heads = 2, 8, 16, 32, 4

    root = jax.random.PRNGKey(0)
    k_params, k_x, k_q, k_kv = jax.random.split(root, 4)

    params = init_attention_layer_params(k_params, d_model, n_heads)

    # Self-attention, default fast path (flash / S-tiled kernel, no attn weights).
    x = jax.random.normal(k_x, (B, L, d_model), jnp.float32)
    self_attn = jax.jit(lambda a: attention_layer_forward(params, a, a, a, None))
    out_s, attn_s = self_attn(x)
    out_s = jax.block_until_ready(out_s)
    assert out_s.shape == (B, L, d_model)
    assert attn_s is None

    ref_y, _ = reference_forward(params, x, x, x)
    err_y = float(jnp.max(jnp.abs(out_s - ref_y)))
    assert err_y < 1e-1, f"self-attention output mismatch: max abs err {err_y}"

    # Cross-attention path (shared K/V source) with attention weights requested.
    q_in = jax.random.normal(k_q, (B, L, d_model), jnp.float32)
    kv_in = jax.random.normal(k_kv, (B, S_cross, d_model), jnp.float32)
    cross_attn = jax.jit(lambda a, b: attention_layer_forward(
        params, a, b, b, None, return_attn=True))
    out_c, attn_c = cross_attn(q_in, kv_in)
    jax.block_until_ready((out_c, attn_c))
    assert out_c.shape == (B, L, d_model)
    assert attn_c.shape == (B, n_heads, L, S_cross)

    ref_yc, ref_ac = reference_forward(params, q_in, kv_in, kv_in)
    err_yc = float(jnp.max(jnp.abs(out_c - ref_yc)))
    err_ac = float(jnp.max(jnp.abs(attn_c - ref_ac)))
    assert err_yc < 1e-1, f"cross-attention output mismatch: max abs err {err_yc}"
    assert err_ac < 5e-2, f"attention weights mismatch: max abs err {err_ac}"

    print("KERNEL_OK")
</pallas_src>

<mosaic_0001>
module attributes {stable_mosaic.version = 11 : i64} {
  func.func @kernel(%arg0: i32, %arg1: i32, %arg2: memref<16x32xbf16, #tpu.memory_space<vmem>>, %arg3: memref<32x32xbf16, #tpu.memory_space<vmem>>, %arg4: memref<1x32xf32, #tpu.memory_space<vmem>>, %arg5: memref<16x32xf32, #tpu.memory_space<vmem>>) attributes {dimension_semantics = [#tpu.dimension_semantics<parallel>, #tpu.dimension_semantics<parallel>], iteration_bounds = array<i64: 1, 1>, scalar_prefetch = 0 : i64, scratch_operands = 0 : i64, tpu.core_type = #tpu.core_type<tc>, window_params = [{transform_indices = @transform_0, window_bounds = array<i64: 16, 32>}, {transform_indices = @transform_1, window_bounds = array<i64: 32, 32>}, {transform_indices = @transform_2, window_bounds = array<i64: 1, 32>}, {transform_indices = @transform_3, window_bounds = array<i64: 16, 32>}]} {
    %c0 = arith.constant 0 : index
    %c0_0 = arith.constant 0 : index
    %0 = vector.load %arg2[%c0, %c0_0] : memref<16x32xbf16, #tpu.memory_space<vmem>>, vector<16x32xbf16>
    %c0_1 = arith.constant 0 : index
    %c0_2 = arith.constant 0 : index
    %1 = vector.load %arg3[%c0_1, %c0_2] : memref<32x32xbf16, #tpu.memory_space<vmem>>, vector<32x32xbf16>
    %c0_3 = arith.constant 0 : index
    %c0_4 = arith.constant 0 : index
    %2 = vector.load %arg4[%c0_3, %c0_4] : memref<1x32xf32, #tpu.memory_space<vmem>>, vector<1x32xf32>
    %cst = arith.constant dense<0.000000e+00> : vector<16x32xf32>
    %3 = tpu.matmul %0, %1, %cst {dimension_numbers = #tpu.dot_dimension_numbers<[1], [0], [0], [1], [0, 0, 1, 1], [], []>} : vector<16x32xbf16>, vector<32x32xbf16>, vector<16x32xf32> -> vector<16x32xf32>
    %4 = vector.broadcast %2 : vector<1x32xf32> to vector<16x32xf32>
    %5 = arith.addf %3, %4 : vector<16x32xf32>
    %c0_5 = arith.constant 0 : index
    %c0_6 = arith.constant 0 : index
    %6 = vector.load %arg5[%c0_5, %c0_6] : memref<16x32xf32, #tpu.memory_space<vmem>>, vector<16x32xf32>
    tpu.vector_store %arg5[%c0_5, %c0_6], %5 {strides = array<i32>} : memref<16x32xf32, #tpu.memory_space<vmem>>, vector<16x32xf32>,
    return
  }
  func.func @transform_0(%arg0: i32, %arg1: i32) -> (i32, i32) {
    %c0_i32 = arith.constant 0 : i32
    %c0_i32_0 = arith.constant 0 : i32
    return %arg0, %c0_i32 : i32, i32
  }
  func.func @transform_1(%arg0: i32, %arg1: i32) -> (i32, i32) {
    %c0_i32 = arith.constant 0 : i32
    %c0_i32_0 = arith.constant 0 : i32
    return %c0_i32, %arg1 : i32, i32
  }
  func.func @transform_2(%arg0: i32, %arg1: i32) -> (i32, i32) {
    %c0_i32 = arith.constant 0 : i32
    %c0_i32_0 = arith.constant 0 : i32
    return %c0_i32, %arg1 : i32, i32
  }
  func.func @transform_3(%arg0: i32, %arg1: i32) -> (i32, i32) {
    %c0_i32 = arith.constant 0 : i32
    return %arg0, %arg1 : i32, i32
  }
}

module attributes {stable_mosaic.version = 11 : i64} {
  func.func @kernel(%arg0: i32, %arg1: i32, %arg2: memref<16x32xf32, #tpu.memory_space<vmem>>, %arg3: memref<32x32xbf16, #tpu.memory_space<vmem>>, %arg4: memref<1x32xf32, #tpu.memory_space<vmem>>, %arg5: memref<32x32xbf16, #tpu.memory_space<vmem>>, %arg6: memref<1x32xf32, #tpu.memory_space<vmem>>, %arg7: memref<32x32xbf16, #tpu.memory_space<vmem>>, %arg8: memref<1x32xf32, #tpu.memory_space<vmem>>, %arg9: memref<16x32xbf16, #tpu.memory_space<vmem>>, %arg10: memref<16x32xbf16, #tpu.memory_space<vmem>>, %arg11: memref<16x32xbf16, #tpu.memory_space<vmem>>) attributes {dimension_semantics = [#tpu.dimension_semantics<parallel>, #tpu.dimension_semantics<parallel>], iteration_bounds = array<i64: 1, 1>, scalar_prefetch = 0 : i64, scratch_operands = 0 : i64, tpu.core_type = #tpu.core_type<tc>, window_params = [{transform_indices = @transform_0, window_bounds = array<i64: 16, 32>}, {transform_indices = @transform_1, window_bounds = array<i64: 32, 32>}, {transform_indices = @transform_2, window_bounds = array<i64: 1, 32>}, {transform_indices = @transform_3, window_bounds = array<i64: 32, 32>}, {transform_indices = @transform_4, window_bounds = array<i64: 1, 32>}, {transform_indices = @transform_5, window_bounds = array<i64: 32, 32>}, {transform_indices = @transform_6, window_bounds = array<i64: 1, 32>}, {transform_indices = @transform_7, window_bounds = array<i64: 16, 32>}, {transform_indices = @transform_8, window_bounds = array<i64: 16, 32>}, {transform_indices = @transform_9, window_bounds = array<i64: 16, 32>}]} {
    %c0 = arith.constant 0 : index
    %c0_0 = arith.constant 0 : index
    %0 = vector.load %arg2[%c0, %c0_0] : memref<16x32xf32, #tpu.memory_space<vmem>>, vector<16x32xf32>
    %1 = arith.truncf %0 : vector<16x32xf32> to vector<16x32xbf16>
    %c0_1 = arith.constant 0 : index
    %c0_2 = arith.constant 0 : index
    %2 = vector.load %arg3[%c0_1, %c0_2] : memref<32x32xbf16, #tpu.memory_space<vmem>>, vector<32x32xbf16>
    %c0_3 = arith.constant 0 : index
    %c0_4 = arith.constant 0 : index
    %3 = vector.load %arg4[%c0_3, %c0_4] : memref<1x32xf32, #tpu.memory_space<vmem>>, vector<1x32xf32>
    %cst = arith.constant dense<0.000000e+00> : vector<16x32xf32>
    %4 = tpu.matmul %1, %2, %cst {dimension_numbers = #tpu.dot_dimension_numbers<[1], [0], [0], [1], [0, 0, 1, 1], [], []>} : vector<16x32xbf16>, vector<32x32xbf16>, vector<16x32xf32> -> vector<16x32xf32>
    %5 = vector.broadcast %3 : vector<1x32xf32> to vector<16x32xf32>
    %6 = arith.addf %4, %5 : vector<16x32xf32>
    %cst_5 = arith.constant 0.353553385 : f32
    %7 = vector.broadcast %cst_5 : f32 to vector<16x32xf32>
    %8 = arith.mulf %6, %7 : vector<16x32xf32>
    %9 = arith.truncf %8 : vector<16x32xf32> to vector<16x32xbf16>
    %c0_6 = arith.constant 0 : index
    %c0_7 = arith.constant 0 : index
    %10 = vector.load %arg9[%c0_6, %c0_7] : memref<16x32xbf16, #tpu.memory_space<vmem>>, vector<16x32xbf16>
    tpu.vector_store %arg9[%c0_6, %c0_7], %9 {strides = array<i32>} : memref<16x32xbf16, #tpu.memory_space<vmem>>, vector<16x32xbf16>,
    %c0_8 = arith.constant 0 : index
    %c0_9 = arith.constant 0 : index
    %11 = vector.load %arg5[%c0_8, %c0_9] : memref<32x32xbf16, #tpu.memory_space<vmem>>, vector<32x32xbf16>
    %c0_10 = arith.constant 0 : index
    %c0_11 = arith.constant 0 : index
    %12 = vector.load %arg6[%c0_10, %c0_11] : memref<1x32xf32, #tpu.memory_space<vmem>>, vector<1x32xf32>
    %cst_12 = arith.constant dense<0.000000e+00> : vector<16x32xf32>
    %13 = tpu.matmul %1, %11, %cst_12 {dimension_numbers = #tpu.dot_dimension_numbers<[1], [0], [0], [1], [0, 0, 1, 1], [], []>} : vector<16x32xbf16>, vector<32x32xbf16>, vector<16x32xf32> -> vector<16x32xf32>
    %14 = vector.broadcast %12 : vector<1x32xf32> to vector<16x32xf32>
    %15 = arith.addf %13, %14 : vector<16x32xf32>
    %16 = arith.truncf %15 : vector<16x32xf32> to vector<16x32xbf16>
    %c0_13 = arith.constant 0 : index
    %c0_14 = arith.constant 0 : index
    %17 = vector.load %arg10[%c0_13, %c0_14] : memref<16x32xbf16, #tpu.memory_space<vmem>>, vector<16x32xbf16>
    tpu.vector_store %arg10[%c0_13, %c0_14], %16 {strides = array<i32>} : memref<16x32xbf16, #tpu.memory_space<vmem>>, vector<16x32xbf16>,
    %c0_15 = arith.constant 0 : index
    %c0_16 = arith.constant 0 : index
    %18 = vector.load %arg7[%c0_15, %c0_16] : memref<32x32xbf16, #tpu.memory_space<vmem>>, vector<32x32xbf16>
    %c0_17 = arith.constant 0 : index
    %c0_18 = arith.constant 0 : index
    %19 = vector.load %arg8[%c0_17, %c0_18] : memref<1x32xf32, #tpu.memory_space<vmem>>, vector<1x32xf32>
    %cst_19 = arith.constant dense<0.000000e+00> : vector<16x32xf32>
    %20 = tpu.matmul %1, %18, %cst_19 {dimension_numbers = #tpu.dot_dimension_numbers<[1], [0], [0], [1], [0, 0, 1, 1], [], []>} : vector<16x32xbf16>, vector<32x32xbf16>, vector<16x32xf32> -> vector<16x32xf32>
    %21 = vector.broadcast %19 : vector<1x32xf32> to vector<16x32xf32>
    %22 = arith.addf %20, %21 : vector<16x32xf32>
    %23 = arith.truncf %22 : vector<16x32xf32> to vector<16x32xbf16>
    %c0_20 = arith.constant 0 : index
    %c0_21 = arith.constant 0 : index
    %24 = vector.load %arg11[%c0_20, %c0_21] : memref<16x32xbf16, #tpu.memory_space<vmem>>, vector<16x32xbf16>
    tpu.vector_store %arg11[%c0_20, %c0_21], %23 {strides = array<i32>} : memref<16x32xbf16, #tpu.memory_space<vmem>>, vector<16x32xbf16>,
    return
  }
  func.func @transform_0(%arg0: i32, %arg1: i32) -> (i32, i32) {
    %c0_i32 = arith.constant 0 : i32
    %c0_i32_0 = arith.constant 0 : i32
    return %arg0, %c0_i32 : i32, i32
  }
  func.func @transform_1(%arg0: i32, %arg1: i32) -> (i32, i32) {
    %c0_i32 = arith.constant 0 : i32
    %c0_i32_0 = arith.constant 0 : i32
    return %c0_i32, %arg1 : i32, i32
  }
  func.func @transform_2(%arg0: i32, %arg1: i32) -> (i32, i32) {
    %c0_i32 = arith.constant 0 : i32
    %c0_i32_0 = arith.constant 0 : i32
    return %c0_i32, %arg1 : i32, i32
  }
  func.func @transform_3(%arg0: i32, %arg1: i32) -> (i32, i32) {
    %c0_i32 = arith.constant 0 : i32
    %c0_i32_0 = arith.constant 0 : i32
    return %c0_i32, %arg1 : i32, i32
  }
  func.func @transform_4(%arg0: i32, %arg1: i32) -> (i32, i32) {
    %c0_i32 = arith.constant 0 : i32
    %c0_i32_0 = arith.constant 0 : i32
    return %c0_i32, %arg1 : i32, i32
  }
  func.func @transform_5(%arg0: i32, %arg1: i32) -> (i32, i32) {
    %c0_i32 = arith.constant 0 : i32
    %c0_i32_0 = arith.constant 0 : i32
    return %c0_i32, %arg1 : i32, i32
  }
  func.func @transform_6(%arg0: i32, %arg1: i32) -> (i32, i32) {
    %c0_i32 = arith.constant 0 : i32
    %c0_i32_0 = arith.constant 0 : i32
    return %c0_i32, %arg1 : i32, i32
  }
  func.func @transform_7(%arg0: i32, %arg1: i32) -> (i32, i32) {
    %c0_i32 = arith.constant 0 : i32
    return %arg0, %arg1 : i32, i32
  }
  func.func @transform_8(%arg0: i32, %arg1: i32) -> (i32, i32) {
    %c0_i32 = arith.constant 0 : i32
    return %arg0, %arg1 : i32, i32
  }
  func.func @transform_9(%arg0: i32, %arg1: i32) -> (i32, i32) {
    %c0_i32 = arith.constant 0 : i32
    return %arg0, %arg1 : i32, i32
  }
}

module attributes {stable_mosaic.version = 11 : i64} {
  func.func @_flash_mha_kernel(%arg0: i32, %arg1: i32, %arg2: i32, %arg3: memref<1x8x32xbf16, #tpu.memory_space<vmem>>, %arg4: memref<1x8x32xbf16, #tpu.memory_space<vmem>>, %arg5: memref<1x8x32xbf16, #tpu.memory_space<vmem>>, %arg6: memref<1x8x32xbf16, #tpu.memory_space<vmem>>, %arg7: memref<4x8x1xf32, #tpu.memory_space<vmem>>, %arg8: memref<4x8x1xf32, #tpu.memory_space<vmem>>, %arg9: memref<4x8x8xf32, #tpu.memory_space<vmem>>) attributes {dimension_semantics = [#tpu.dimension_semantics<parallel>, #tpu.dimension_semantics<parallel>, #tpu.dimension_semantics<arbitrary>], iteration_bounds = array<i64: 2, 1, 1>, scalar_prefetch = 0 : i64, scratch_operands = 3 : i64, tpu.core_type = #tpu.core_type<tc>, window_params = [{transform_indices = @transform_0, window_bounds = array<i64: 1, 8, 32>}, {transform_indices = @transform_1, window_bounds = array<i64: 1, 8, 32>}, {transform_indices = @transform_2, window_bounds = array<i64: 1, 8, 32>}, {transform_indices = @transform_3, window_bounds = array<i64: 1, 8, 32>}]} {
    %c0_i32 = arith.constant 0 : i32
    %0 = arith.cmpi eq, %arg2, %c0_i32 : i32
    %1 = arith.extui %0 : i1 to i32
    %c0_i32_0 = arith.constant 0 : i32
    %2 = arith.cmpi ne, %1, %c0_i32_0 : i32
    scf.if %2 {
      %cst_95 = arith.constant 0xFF800000 : f32
      %156 = vector.broadcast %cst_95 : f32 to vector<4x8x1xf32>
      %c0_96 = arith.constant 0 : index
      %c0_97 = arith.constant 0 : index
      %c0_98 = arith.constant 0 : index
      %157 = vector.load %arg7[%c0_96, %c0_97, %c0_98] : memref<4x8x1xf32, #tpu.memory_space<vmem>>, vector<4x8x1xf32>
      tpu.vector_store %arg7[%c0_96, %c0_97, %c0_98], %156 {strides = array<i32>} : memref<4x8x1xf32, #tpu.memory_space<vmem>>, vector<4x8x1xf32>,
      %cst_99 = arith.constant 0.000000e+00 : f32
      %158 = vector.broadcast %cst_99 : f32 to vector<4x8x1xf32>
      %c0_100 = arith.constant 0 : index
      %c0_101 = arith.constant 0 : index
      %c0_102 = arith.constant 0 : index
      %159 = vector.load %arg8[%c0_100, %c0_101, %c0_102] : memref<4x8x1xf32, #tpu.memory_space<vmem>>, vector<4x8x1xf32>
      tpu.vector_store %arg8[%c0_100, %c0_101, %c0_102], %158 {strides = array<i32>} : memref<4x8x1xf32, #tpu.memory_space<vmem>>, vector<4x8x1xf32>,
      %cst_103 = arith.constant 0.000000e+00 : f32
      %160 = vector.broadcast %cst_103 : f32 to vector<4x8x8xf32>
      %c0_104 = arith.constant 0 : index
      %c0_105 = arith.constant 0 : index
      %c0_106 = arith.constant 0 : index
      %161 = vector.load %arg9[%c0_104, %c0_105, %c0_106] : memref<4x8x8xf32, #tpu.memory_space<vmem>>, vector<4x8x8xf32>
      tpu.vector_store %arg9[%c0_104, %c0_105, %c0_106], %160 {strides = array<i32>} : memref<4x8x8xf32, #tpu.memory_space<vmem>>, vector<4x8x8xf32>,
    } else {
    }
    %c0 = arith.constant 0 : index
    %c0_1 = arith.constant 0 : index
    %c0_2 = arith.constant 0 : index
    %3 = vector.load %arg3[%c0, %c0_1, %c0_2] : memref<1x8x32xbf16, #tpu.memory_space<vmem>>, vector<1x8x32xbf16>
    %4 = vector.shape_cast %3 : vector<1x8x32xbf16> to vector<8x32xbf16>
    %c0_3 = arith.constant 0 : index
    %c0_4 = arith.constant 0 : index
    %c0_5 = arith.constant 0 : index
    %5 = vector.load %arg4[%c0_3, %c0_4, %c0_5] : memref<1x8x32xbf16, #tpu.memory_space<vmem>>, vector<1x8x32xbf16>
    %6 = vector.shape_cast %5 : vector<1x8x32xbf16> to vector<8x32xbf16>
    %c0_6 = arith.constant 0 : index
    %c0_7 = arith.constant 0 : index
    %c0_8 = arith.constant 0 : index
    %7 = vector.load %arg5[%c0_6, %c0_7, %c0_8] : memref<1x8x32xbf16, #tpu.memory_space<vmem>>, vector<1x8x32xbf16>
    %8 = vector.shape_cast %7 : vector<1x8x32xbf16> to vector<8x32xbf16>
    %9 = vector.extract_strided_slice %4 {offsets = [0, 0], sizes = [8, 8], strides = [1, 1]} : vector<8x32xbf16> to vector<8x8xbf16>
    %10 = vector.extract_strided_slice %6 {offsets = [0, 0], sizes = [8, 8], strides = [1, 1]} : vector<8x32xbf16> to vector<8x8xbf16>
    %11 = vector.extract_strided_slice %8 {offsets = [0, 0], sizes = [8, 8], strides = [1, 1]} : vector<8x32xbf16> to vector<8x8xbf16>
    %cst = arith.constant dense<0.000000e+00> : vector<8x8xf32>
    %12 = tpu.matmul %9, %10, %cst {dimension_numbers = #tpu.dot_dimension_numbers<[1], [1], [0], [0], [0, 0, 1, 0], [], []>} : vector<8x8xbf16>, vector<8x8xbf16>, vector<8x8xf32> -> vector<8x8xf32>
    %c0_9 = arith.constant 0 : index
    %c0_10 = arith.constant 0 : index
    %c0_11 = arith.constant 0 : index
    %13 = vector.load %arg7[%c0_9, %c0_10, %c0_11] : memref<4x8x1xf32, #tpu.memory_space<vmem>>, vector<1x8x1xf32>
    %14 = vector.shape_cast %13 : vector<1x8x1xf32> to vector<8x1xf32>
    %cst_12 = arith.constant dense<0xFF800000> : vector<8xf32>
    %15 = vector.multi_reduction <maximumf>, %12, %cst_12 [1] : vector<8x8xf32> to vector<8xf32>
    %16 = vector.shape_cast %15 : vector<8xf32> to vector<8x1xf32>
    %17 = arith.maximumf %14, %16 : vector<8x1xf32>
    %18 = arith.subf %14, %17 : vector<8x1xf32>
    %19 = math.exp %18 : vector<8x1xf32>
    %20 = vector.broadcast %17 : vector<8x1xf32> to vector<8x8xf32>
    %21 = arith.subf %12, %20 : vector<8x8xf32>
    %22 = math.exp %21 : vector<8x8xf32>
    %c0_13 = arith.constant 0 : index
    %c0_14 = arith.constant 0 : index
    %c0_15 = arith.constant 0 : index
    %23 = vector.load %arg8[%c0_13, %c0_14, %c0_15] : memref<4x8x1xf32, #tpu.memory_space<vmem>>, vector<1x8x1xf32>
    %24 = vector.shape_cast %23 : vector<1x8x1xf32> to vector<8x1xf32>
    %25 = arith.mulf %19, %24 : vector<8x1xf32>
    %cst_16 = arith.constant dense<0.000000e+00> : vector<8xf32>
    %26 = vector.multi_reduction <add>, %22, %cst_16 [1] : vector<8x8xf32> to vector<8xf32>
    %27 = vector.shape_cast %26 : vector<8xf32> to vector<8x1xf32>
    %28 = arith.addf %25, %27 : vector<8x1xf32>
    %c0_17 = arith.constant 0 : index
    %c0_18 = arith.constant 0 : index
    %c0_19 = arith.constant 0 : index
    %29 = vector.load %arg8[%c0_17, %c0_18, %c0_19] : memref<4x8x1xf32, #tpu.memory_space<vmem>>, vector<1x8x1xf32>
    %30 = vector.shape_cast %29 : vector<1x8x1xf32> to vector<8x1xf32>
    %31 = vector.shape_cast %28 : vector<8x1xf32> to vector<1x8x1xf32>
    tpu.vector_store %arg8[%c0_17, %c0_18, %c0_19], %31 {strides = array<i32>} : memref<4x8x1xf32, #tpu.memory_space<vmem>>, vector<1x8x1xf32>,
    %c0_20 = arith.constant 0 : index
    %c0_21 = arith.constant 0 : index
    %c0_22 = arith.constant 0 : index
    %32 = vector.load %arg9[%c0_20, %c0_21, %c0_22] : memref<4x8x8xf32, #tpu.memory_space<vmem>>, vector<1x8x8xf32>
    %33 = vector.shape_cast %32 : vector<1x8x8xf32> to vector<8x8xf32>
    %34 = vector.broadcast %19 : vector<8x1xf32> to vector<8x8xf32>
    %35 = arith.mulf %34, %33 : vector<8x8xf32>
    %36 = arith.truncf %22 : vector<8x8xf32> to vector<8x8xbf16>
    %cst_23 = arith.constant dense<0.000000e+00> : vector<8x8xf32>
    %37 = tpu.matmul %36, %11, %cst_23 {dimension_numbers = #tpu.dot_dimension_numbers<[1], [0], [0], [1], [0, 0, 1, 1], [], []>} : vector<8x8xbf16>, vector<8x8xbf16>, vector<8x8xf32> -> vector<8x8xf32>
    %38 = arith.addf %35, %37 : vector<8x8xf32>
    %c0_24 = arith.constant 0 : index
    %c0_25 = arith.constant 0 : index
    %c0_26 = arith.constant 0 : index
    %39 = vector.load %arg9[%c0_24, %c0_25, %c0_26] : memref<4x8x8xf32, #tpu.memory_space<vmem>>, vector<1x8x8xf32>
    %40 = vector.shape_cast %39 : vector<1x8x8xf32> to vector<8x8xf32>
    %41 = vector.shape_cast %38 : vector<8x8xf32> to vector<1x8x8xf32>
    tpu.vector_store %arg9[%c0_24, %c0_25, %c0_26], %41 {strides = array<i32>} : memref<4x8x8xf32, #tpu.memory_space<vmem>>, vector<1x8x8xf32>,
    %c0_27 = arith.constant 0 : index
    %c0_28 = arith.constant 0 : index
    %c0_29 = arith.constant 0 : index
    %42 = vector.load %arg7[%c0_27, %c0_28, %c0_29] : memref<4x8x1xf32, #tpu.memory_space<vmem>>, vector<1x8x1xf32>
    %43 = vector.shape_cast %42 : vector<1x8x1xf32> to vector<8x1xf32>
    %44 = vector.shape_cast %17 : vector<8x1xf32> to vector<1x8x1xf32>
    tpu.vector_store %arg7[%c0_27, %c0_28, %c0_29], %44 {strides = array<i32>} : memref<4x8x1xf32, #tpu.memory_space<vmem>>, vector<1x8x1xf32>,
    %45 = vector.extract_strided_slice %4 {offsets = [0, 8], sizes = [8, 8], strides = [1, 1]} : vector<8x32xbf16> to vector<8x8xbf16>
    %46 = vector.extract_strided_slice %6 {offsets = [0, 8], sizes = [8, 8], strides = [1, 1]} : vector<8x32xbf16> to vector<8x8xbf16>
    %47 = vector.extract_strided_slice %8 {offsets = [0, 8], sizes = [8, 8], strides = [1, 1]} : vector<8x32xbf16> to vector<8x8xbf16>
    %cst_30 = arith.constant dense<0.000000e+00> : vector<8x8xf32>
    %48 = tpu.matmul %45, %46, %cst_30 {dimension_numbers = #tpu.dot_dimension_numbers<[1], [1], [0], [0], [0, 0, 1, 0], [], []>} : vector<8x8xbf16>, vector<8x8xbf16>, vector<8x8xf32> -> vector<8x8xf32>
    %c1 = arith.constant 1 : index
    %c0_31 = arith.constant 0 : index
    %c0_32 = arith.constant 0 : index
    %49 = vector.load %arg7[%c1, %c0_31, %c0_32] : memref<4x8x1xf32, #tpu.memory_space<vmem>>, vector<1x8x1xf32>
    %50 = vector.shape_cast %49 : vector<1x8x1xf32> to vector<8x1xf32>
    %cst_33 = arith.constant dense<0xFF800000> : vector<8xf32>
    %51 = vector.multi_reduction <maximumf>, %48, %cst_33 [1] : vector<8x8xf32> to vector<8xf32>
    %52 = vector.shape_cast %51 : vector<8xf32> to vector<8x1xf32>
    %53 = arith.maximumf %50, %52 : vector<8x1xf32>
    %54 = arith.subf %50, %53 : vector<8x1xf32>
    %55 = math.exp %54 : vector<8x1xf32>
    %56 = vector.broadcast %53 : vector<8x1xf32> to vector<8x8xf32>
    %57 = arith.subf %48, %56 : vector<8x8xf32>
    %58 = math.exp %57 : vector<8x8xf32>
    %c1_34 = arith.constant 1 : index
    %c0_35 = arith.constant 0 : index
    %c0_36 = arith.constant 0 : index
    %59 = vector.load %arg8[%c1_34, %c0_35, %c0_36] : memref<4x8x1xf32, #tpu.memory_space<vmem>>, vector<1x8x1xf32>
    %60 = vector.shape_cast %59 : vector<1x8x1xf32> to vector<8x1xf32>
    %61 = arith.mulf %55, %60 : vector<8x1xf32>
    %cst_37 = arith.constant dense<0.000000e+00> : vector<8xf32>
    %62 = vector.multi_reduction <add>, %58, %cst_37 [1] : vector<8x8xf32> to vector<8xf32>
    %63 = vector.shape_cast %62 : vector<8xf32> to vector<8x1xf32>
    %64 = arith.addf %61, %63 : vector<8x1xf32>
    %c1_38 = arith.constant 1 : index
    %c0_39 = arith.constant 0 : index
    %c0_40 = arith.constant 0 : index
    %65 = vector.load %arg8[%c1_38, %c0_39, %c0_40] : memref<4x8x1xf32, #tpu.memory_space<vmem>>, vector<1x8x1xf32>
    %66 = vector.shape_cast %65 : vector<1x8x1xf32> to vector<8x1xf32>
    %67 = vector.shape_cast %64 : vector<8x1xf32> to vector<1x8x1xf32>
    tpu.vector_store %arg8[%c1_38, %c0_39, %c0_40], %67 {strides = array<i32>} : memref<4x8x1xf32, #tpu.memory_space<vmem>>, vector<1x8x1xf32>,
    %c1_41 = arith.constant 1 : index
    %c0_42 = arith.constant 0 : index
    %c0_43 = arith.constant 0 : index
    %68 = vector.load %arg9[%c1_41, %c0_42, %c0_43] : memref<4x8x8xf32, #tpu.memory_space<vmem>>, vector<1x8x8xf32>
    %69 = vector.shape_cast %68 : vector<1x8x8xf32> to vector<8x8xf32>
    %70 = vector.broadcast %55 : vector<8x1xf32> to vector<8x8xf32>
    %71 = arith.mulf %70, %69 : vector<8x8xf32>
    %72 = arith.truncf %58 : vector<8x8xf32> to vector<8x8xbf16>
    %cst_44 = arith.constant dense<0.000000e+00> : vector<8x8xf32>
    %73 = tpu.matmul %72, %47, %cst_44 {dimension_numbers = #tpu.dot_dimension_numbers<[1], [0], [0], [1], [0, 0, 1, 1], [], []>} : vector<8x8xbf16>, vector<8x8xbf16>, vector<8x8xf32> -> vector<8x8xf32>
    %74 = arith.addf %71, %73 : vector<8x8xf32>
    %c1_45 = arith.constant 1 : index
    %c0_46 = arith.constant 0 : index
    %c0_47 = arith.constant 0 : index
    %75 = vector.load %arg9[%c1_45, %c0_46, %c0_47] : memref<4x8x8xf32, #tpu.memory_space<vmem>>, vector<1x8x8xf32>
    %76 = vector.shape_cast %75 : vector<1x8x8xf32> to vector<8x8xf32>
    %77 = vector.shape_cast %74 : vector<8x8xf32> to vector<1x8x8xf32>
    tpu.vector_store %arg9[%c1_45, %c0_46, %c0_47], %77 {strides = array<i32>} : memref<4x8x8xf32, #tpu.memory_space<vmem>>, vector<1x8x8xf32>,
    %c1_48 = arith.constant 1 : index
    %c0_49 = arith.constant 0 : index
    %c0_50 = arith.constant 0 : index
    %78 = vector.load %arg7[%c1_48, %c0_49, %c0_50] : memref<4x8x1xf32, #tpu.memory_space<vmem>>, vector<1x8x1xf32>
    %79 = vector.shape_cast %78 : vector<1x8x1xf32> to vector<8x1xf32>
    %80 = vector.shape_cast %53 : vector<8x1xf32> to vector<1x8x1xf32>
    tpu.vector_store %arg7[%c1_48, %c0_49, %c0_50], %80 {strides = array<i32>} : memref<4x8x1xf32, #tpu.memory_space<vmem>>, vector<1x8x1xf32>,
    %81 = vector.extract_strided_slice %4 {offsets = [0, 16], sizes = [8, 8], strides = [1, 1]} : vector<8x32xbf16> to vector<8x8xbf16>
    %82 = vector.extract_strided_slice %6 {offsets = [0, 16], sizes = [8, 8], strides = [1, 1]} : vector<8x32xbf16> to vector<8x8xbf16>
    %83 = vector.extract_strided_slice %8 {offsets = [0, 16], sizes = [8, 8], strides = [1, 1]} : vector<8x32xbf16> to vector<8x8xbf16>
    %cst_51 = arith.constant dense<0.000000e+00> : vector<8x8xf32>
    %84 = tpu.matmul %81, %82, %cst_51 {dimension_numbers = #tpu.dot_dimension_numbers<[1], [1], [0], [0], [0, 0, 1, 0], [], []>} : vector<8x8xbf16>, vector<8x8xbf16>, vector<8x8xf32> -> vector<8x8xf32>
    %c2 = arith.constant 2 : index
    %c0_52 = arith.constant 0 : index
    %c0_53 = arith.constant 0 : index
    %85 = vector.load %arg7[%c2, %c0_52, %c0_53] : memref<4x8x1xf32, #tpu.memory_space<vmem>>, vector<1x8x1xf32>
    %86 = vector.shape_cast %85 : vector<1x8x1xf32> to vector<8x1xf32>
    %cst_54 = arith.constant dense<0xFF800000> : vector<8xf32>
    %87 = vector.multi_reduction <maximumf>, %84, %cst_54 [1] : vector<8x8xf32> to vector<8xf32>
    %88 = vector.shape_cast %87 : vector<8xf32> to vector<8x1xf32>
    %89 = arith.maximumf %86, %88 : vector<8x1xf32>
    %90 = arith.subf %86, %89 : vector<8x1xf32>
    %91 = math.exp %90 : vector<8x1xf32>
    %92 = vector.broadcast %89 : vector<8x1xf32> to vector<8x8xf32>
    %93 = arith.subf %84, %92 : vector<8x8xf32>
    %94 = math.exp %93 : vector<8x8xf32>
    %c2_55 = arith.constant 2 : index
    %c0_56 = arith.constant 0 : index
    %c0_57 = arith.constant 0 : index
    %95 = vector.load %arg8[%c2_55, %c0_56, %c0_57] : memref<4x8x1xf32, #tpu.memory_space<vmem>>, vector<1x8x1xf32>
    %96 = vector.shape_cast %95 : vector<1x8x1xf32> to vector<8x1xf32>
    %97 = arith.mulf %91, %96 : vector<8x1xf32>
    %cst_58 = arith.constant dense<0.000000e+00> : vector<8xf32>
    %98 = vector.multi_reduction <add>, %94, %cst_58 [1] : vector<8x8xf32> to vector<8xf32>
    %99 = vector.shape_cast %98 : vector<8xf32> to vector<8x1xf32>
    %100 = arith.addf %97, %99 : vector<8x1xf32>
    %c2_59 = arith.constant 2 : index
    %c0_60 = arith.constant 0 : index
    %c0_61 = arith.constant 0 : index
    %101 = vector.load %arg8[%c2_59, %c0_60, %c0_61] : memref<4x8x1xf32, #tpu.memory_space<vmem>>, vector<1x8x1xf32>
    %102 = vector.shape_cast %101 : vector<1x8x1xf32> to vector<8x1xf32>
    %103 = vector.shape_cast %100 : vector<8x1xf32> to vector<1x8x1xf32>
    tpu.vector_store %arg8[%c2_59, %c0_60, %c0_61], %103 {strides = array<i32>} : memref<4x8x1xf32, #tpu.memory_space<vmem>>, vector<1x8x1xf32>,
    %c2_62 = arith.constant 2 : index
    %c0_63 = arith.constant 0 : index
    %c0_64 = arith.constant 0 : index
    %104 = vector.load %arg9[%c2_62, %c0_63, %c0_64] : memref<4x8x8xf32, #tpu.memory_space<vmem>>, vector<1x8x8xf32>
    %105 = vector.shape_cast %104 : vector<1x8x8xf32> to vector<8x8xf32>
    %106 = vector.broadcast %91 : vector<8x1xf32> to vector<8x8xf32>
    %107 = arith.mulf %106, %105 : vector<8x8xf32>
    %108 = arith.truncf %94 : vector<8x8xf32> to vector<8x8xbf16>
    %cst_65 = arith.constant dense<0.000000e+00> : vector<8x8xf32>
    %109 = tpu.matmul %108, %83, %cst_65 {dimension_numbers = #tpu.dot_dimension_numbers<[1], [0], [0], [1], [0, 0, 1, 1], [], []>} : vector<8x8xbf16>, vector<8x8xbf16>, vector<8x8xf32> -> vector<8x8xf32>
    %110 = arith.addf %107, %109 : vector<8x8xf32>
    %c2_66 = arith.constant 2 : index
    %c0_67 = arith.constant 0 : index
    %c0_68 = arith.constant 0 : index
    %111 = vector.load %arg9[%c2_66, %c0_67, %c0_68] : memref<4x8x8xf32, #tpu.memory_space<vmem>>, vector<1x8x8xf32>
    %112 = vector.shape_cast %111 : vector<1x8x8xf32> to vector<8x8xf32>
    %113 = vector.shape_cast %110 : vector<8x8xf32> to vector<1x8x8xf32>
    tpu.vector_store %arg9[%c2_66, %c0_67, %c0_68], %113 {strides = array<i32>} : memref<4x8x8xf32, #tpu.memory_space<vmem>>, vector<1x8x8xf32>,
    %c2_69 = arith.constant 2 : index
    %c0_70 = arith.constant 0 : index
    %c0_71 = arith.constant 0 : index
    %114 = vector.load %arg7[%c2_69, %c0_70, %c0_71] : memref<4x8x1xf32, #tpu.memory_space<vmem>>, vector<1x8x1xf32>
    %115 = vector.shape_cast %114 : vector<1x8x1xf32> to vector<8x1xf32>
    %116 = vector.shape_cast %89 : vector<8x1xf32> to vector<1x8x1xf32>
    tpu.vector_store %arg7[%c2_69, %c0_70, %c0_71], %116 {strides = array<i32>} : memref<4x8x1xf32, #tpu.memory_space<vmem>>, vector<1x8x1xf32>,
    %117 = vector.extract_strided_slice %4 {offsets = [0, 24], sizes = [8, 8], strides = [1, 1]} : vector<8x32xbf16> to vector<8x8xbf16>
    %118 = vector.extract_strided_slice %6 {offsets = [0, 24], sizes = [8, 8], strides = [1, 1]} : vector<8x32xbf16> to vector<8x8xbf16>
    %119 = vector.extract_strided_slice %8 {offsets = [0, 24], sizes = [8, 8], strides = [1, 1]} : vector<8x32xbf16> to vector<8x8xbf16>
    %cst_72 = arith.constant dense<0.000000e+00> : vector<8x8xf32>
    %120 = tpu.matmul %117, %118, %cst_72 {dimension_numbers = #tpu.dot_dimension_numbers<[1], [1], [0], [0], [0, 0, 1, 0], [], []>} : vector<8x8xbf16>, vector<8x8xbf16>, vector<8x8xf32> -> vector<8x8xf32>
    %c3 = arith.constant 3 : index
    %c0_73 = arith.constant 0 : index
    %c0_74 = arith.constant 0 : index
    %121 = vector.load %arg7[%c3, %c0_73, %c0_74] : memref<4x8x1xf32, #tpu.memory_space<vmem>>, vector<1x8x1xf32>
    %122 = vector.shape_cast %121 : vector<1x8x1xf32> to vector<8x1xf32>
    %cst_75 = arith.constant dense<0xFF800000> : vector<8xf32>
    %123 = vector.multi_reduction <maximumf>, %120, %cst_75 [1] : vector<8x8xf32> to vector<8xf32>
    %124 = vector.shape_cast %123 : vector<8xf32> to vector<8x1xf32>
    %125 = arith.maximumf %122, %124 : vector<8x1xf32>
    %126 = arith.subf %122, %125 : vector<8x1xf32>
    %127 = math.exp %126 : vector<8x1xf32>
    %128 = vector.broadcast %125 : vector<8x1xf32> to vector<8x8xf32>
    %129 = arith.subf %120, %128 : vector<8x8xf32>
    %130 = math.exp %129 : vector<8x8xf32>
    %c3_76 = arith.constant 3 : index
    %c0_77 = arith.constant 0 : index
    %c0_78 = arith.constant 0 : index
    %131 = vector.load %arg8[%c3_76, %c0_77, %c0_78] : memref<4x8x1xf32, #tpu.memory_space<vmem>>, vector<1x8x1xf32>
    %132 = vector.shape_cast %131 : vector<1x8x1xf32> to vector<8x1xf32>
    %133 = arith.mulf %127, %132 : vector<8x1xf32>
    %cst_79 = arith.constant dense<0.000000e+00> : vector<8xf32>
    %134 = vector.multi_reduction <add>, %130, %cst_79 [1] : vector<8x8xf32> to vector<8xf32>
    %135 = vector.shape_cast %134 : vector<8xf32> to vector<8x1xf32>
    %136 = arith.addf %133, %135 : vector<8x1xf32>
    %c3_80 = arith.constant 3 : index
    %c0_81 = arith.constant 0 : index
    %c0_82 = arith.constant 0 : index
    %137 = vector.load %arg8[%c3_80, %c0_81, %c0_82] : memref<4x8x1xf32, #tpu.memory_space<vmem>>, vector<1x8x1xf32>
    %138 = vector.shape_cast %137 : vector<1x8x1xf32> to vector<8x1xf32>
    %139 = vector.shape_cast %136 : vector<8x1xf32> to vector<1x8x1xf32>
    tpu.vector_store %arg8[%c3_80, %c0_81, %c0_82], %139 {strides = array<i32>} : memref<4x8x1xf32, #tpu.memory_space<vmem>>, vector<1x8x1xf32>,
    %c3_83 = arith.constant 3 : index
    %c0_84 = arith.constant 0 : index
    %c0_85 = arith.constant 0 : index
    %140 = vector.load %arg9[%c3_83, %c0_84, %c0_85] : memref<4x8x8xf32, #tpu.memory_space<vmem>>, vector<1x8x8xf32>
    %141 = vector.shape_cast %140 : vector<1x8x8xf32> to vector<8x8xf32>
    %142 = vector.broadcast %127 : vector<8x1xf32> to vector<8x8xf32>
    %143 = arith.mulf %142, %141 : vector<8x8xf32>
    %144 = arith.truncf %130 : vector<8x8xf32> to vector<8x8xbf16>
    %cst_86 = arith.constant dense<0.000000e+00> : vector<8x8xf32>
    %145 = tpu.matmul %144, %119, %cst_86 {dimension_numbers = #tpu.dot_dimension_numbers<[1], [0], [0], [1], [0, 0, 1, 1], [], []>} : vector<8x8xbf16>, vector<8x8xbf16>, vector<8x8xf32> -> vector<8x8xf32>
    %146 = arith.addf %143, %145 : vector<8x8xf32>
    %c3_87 = arith.constant 3 : index
    %c0_88 = arith.constant 0 : index
    %c0_89 = arith.constant 0 : index
    %147 = vector.load %arg9[%c3_87, %c0_88, %c0_89] : memref<4x8x8xf32, #tpu.memory_space<vmem>>, vector<1x8x8xf32>
    %148 = vector.shape_cast %147 : vector<1x8x8xf32> to vector<8x8xf32>
    %149 = vector.shape_cast %146 : vector<8x8xf32> to vector<1x8x8xf32>
    tpu.vector_store %arg9[%c3_87, %c0_88, %c0_89], %149 {strides = array<i32>} : memref<4x8x8xf32, #tpu.memory_space<vmem>>, vector<1x8x8xf32>,
    %c3_90 = arith.constant 3 : index
    %c0_91 = arith.constant 0 : index
    %c0_92 = arith.constant 0 : index
    %150 = vector.load %arg7[%c3_90, %c0_91, %c0_92] : memref<4x8x1xf32, #tpu.memory_space<vmem>>, vector<1x8x1xf32>
    %151 = vector.shape_cast %150 : vector<1x8x1xf32> to vector<8x1xf32>
    %152 = vector.shape_cast %125 : vector<8x1xf32> to vector<1x8x1xf32>
    tpu.vector_store %arg7[%c3_90, %c0_91, %c0_92], %152 {strides = array<i32>} : memref<4x8x1xf32, #tpu.memory_space<vmem>>, vector<1x8x1xf32>,
    %c0_i32_93 = arith.constant 0 : i32
    %153 = arith.cmpi eq, %arg2, %c0_i32_93 : i32
    %154 = arith.extui %153 : i1 to i32
    %c0_i32_94 = arith.constant 0 : i32
    %155 = arith.cmpi ne, %154, %c0_i32_94 : i32
    scf.if %155 {
      %c0_95 = arith.constant 0 : index
      %c0_96 = arith.constant 0 : index
      %c0_97 = arith.constant 0 : index
      %156 = vector.load %arg8[%c0_95, %c0_96, %c0_97] : memref<4x8x1xf32, #tpu.memory_space<vmem>>, vector<1x8x1xf32>
      %157 = vector.shape_cast %156 : vector<1x8x1xf32> to vector<8x1xf32>
      %158 = tpu.reciprocal %157 {approx = true} : vector<8x1xf32> -> vector<8x1xf32>
      %c0_98 = arith.constant 0 : index
      %c0_99 = arith.constant 0 : index
      %c0_100 = arith.constant 0 : index
      %159 = vector.load %arg9[%c0_98, %c0_99, %c0_100] : memref<4x8x8xf32, #tpu.memory_space<vmem>>, vector<1x8x8xf32>
      %160 = vector.shape_cast %159 : vector<1x8x8xf32> to vector<8x8xf32>
      %161 = vector.broadcast %158 : vector<8x1xf32> to vector<8x8xf32>
      %162 = arith.mulf %160, %161 : vector<8x8xf32>
      %163 = arith.truncf %162 : vector<8x8xf32> to vector<8x8xbf16>
      %c0_101 = arith.constant 0 : index
      %c0_102 = arith.constant 0 : index
      %c0_103 = arith.constant 0 : index
      %164 = vector.load %arg6[%c0_101, %c0_102, %c0_103] : memref<1x8x32xbf16, #tpu.memory_space<vmem>>, vector<1x8x8xbf16>
      %165 = vector.shape_cast %164 : vector<1x8x8xbf16> to vector<8x8xbf16>
      %166 = vector.shape_cast %163 : vector<8x8xbf16> to vector<1x8x8xbf16>
      tpu.vector_store %arg6[%c0_101, %c0_102, %c0_103], %166 {strides = array<i32>} : memref<1x8x32xbf16, #tpu.memory_space<vmem>>, vector<1x8x8xbf16>,
      %c1_104 = arith.constant 1 : index
      %c0_105 = arith.constant 0 : index
      %c0_106 = arith.constant 0 : index
      %167 = vector.load %arg8[%c1_104, %c0_105, %c0_106] : memref<4x8x1xf32, #tpu.memory_space<vmem>>, vector<1x8x1xf32>
      %168 = vector.shape_cast %167 : vector<1x8x1xf32> to vector<8x1xf32>
      %169 = tpu.reciprocal %168 {approx = true} : vector<8x1xf32> -> vector<8x1xf32>
      %c1_107 = arith.constant 1 : index
      %c0_108 = arith.constant 0 : index
      %c0_109 = arith.constant 0 : index
      %170 = vector.load %arg9[%c1_107, %c0_108, %c0_109] : memref<4x8x8xf32, #tpu.memory_space<vmem>>, vector<1x8x8xf32>
      %171 = vector.shape_cast %170 : vector<1x8x8xf32> to vector<8x8xf32>
      %172 = vector.broadcast %169 : vector<8x1xf32> to vector<8x8xf32>
      %173 = arith.mulf %171, %172 : vector<8x8xf32>
      %174 = arith.truncf %173 : vector<8x8xf32> to vector<8x8xbf16>
      %c0_110 = arith.constant 0 : index
      %c0_111 = arith.constant 0 : index
      %c8 = arith.constant 8 : index
      %175 = vector.load %arg6[%c0_110, %c0_111, %c8] : memref<1x8x32xbf16, #tpu.memory_space<vmem>>, vector<1x8x8xbf16>
      %176 = vector.shape_cast %175 : vector<1x8x8xbf16> to vector<8x8xbf16>
      %177 = vector.shape_cast %174 : vector<8x8xbf16> to vector<1x8x8xbf16>
      tpu.vector_store %arg6[%c0_110, %c0_111, %c8], %177 {strides = array<i32>} : memref<1x8x32xbf16, #tpu.memory_space<vmem>>, vector<1x8x8xbf16>,
      %c2_112 = arith.constant 2 : index
      %c0_113 = arith.constant 0 : index
      %c0_114 = arith.constant 0 : index
      %178 = vector.load %arg8[%c2_112, %c0_113, %c0_114] : memref<4x8x1xf32, #tpu.memory_space<vmem>>, vector<1x8x1xf32>
      %179 = vector.shape_cast %178 : vector<1x8x1xf32> to vector<8x1xf32>
      %180 = tpu.reciprocal %179 {approx = true} : vector<8x1xf32> -> vector<8x1xf32>
      %c2_115 = arith.constant 2 : index
      %c0_116 = arith.constant 0 : index
      %c0_117 = arith.constant 0 : index
      %181 = vector.load %arg9[%c2_115, %c0_116, %c0_117] : memref<4x8x8xf32, #tpu.memory_space<vmem>>, vector<1x8x8xf32>
      %182 = vector.shape_cast %181 : vector<1x8x8xf32> to vector<8x8xf32>
      %183 = vector.broadcast %180 : vector<8x1xf32> to vector<8x8xf32>
      %184 = arith.mulf %182, %183 : vector<8x8xf32>
      %185 = arith.truncf %184 : vector<8x8xf32> to vector<8x8xbf16>
      %c0_118 = arith.constant 0 : index
      %c0_119 = arith.constant 0 : index
      %c16 = arith.constant 16 : index
      %186 = vector.load %arg6[%c0_118, %c0_119, %c16] : memref<1x8x32xbf16, #tpu.memory_space<vmem>>, vector<1x8x8xbf16>
      %187 = vector.shape_cast %186 : vector<1x8x8xbf16> to vector<8x8xbf16>
      %188 = vector.shape_cast %185 : vector<8x8xbf16> to vector<1x8x8xbf16>
      tpu.vector_store %arg6[%c0_118, %c0_119, %c16], %188 {strides = array<i32>} : memref<1x8x32xbf16, #tpu.memory_space<vmem>>, vector<1x8x8xbf16>,
      %c3_120 = arith.constant 3 : index
      %c0_121 = arith.constant 0 : index
      %c0_122 = arith.constant 0 : index
      %189 = vector.load %arg8[%c3_120, %c0_121, %c0_122] : memref<4x8x1xf32, #tpu.memory_space<vmem>>, vector<1x8x1xf32>
      %190 = vector.shape_cast %189 : vector<1x8x1xf32> to vector<8x1xf32>
      %191 = tpu.reciprocal %190 {approx = true} : vector<8x1xf32> -> vector<8x1xf32>
      %c3_123 = arith.constant 3 : index
      %c0_124 = arith.constant 0 : index
      %c0_125 = arith.constant 0 : index
      %192 = vector.load %arg9[%c3_123, %c0_124, %c0_125] : memref<4x8x8xf32, #tpu.memory_space<vmem>>, vector<1x8x8xf32>
      %193 = vector.shape_cast %192 : vector<1x8x8xf32> to vector<8x8xf32>
      %194 = vector.broadcast %191 : vector<8x1xf32> to vector<8x8xf32>
      %195 = arith.mulf %193, %194 : vector<8x8xf32>
      %196 = arith.truncf %195 : vector<8x8xf32> to vector<8x8xbf16>
      %c0_126 = arith.constant 0 : index
      %c0_127 = arith.constant 0 : index
      %c24 = arith.constant 24 : index
      %197 = vector.load %arg6[%c0_126, %c0_127, %c24] : memref<1x8x32xbf16, #tpu.memory_space<vmem>>, vector<1x8x8xbf16>
      %198 = vector.shape_cast %197 : vector<1x8x8xbf16> to vector<8x8xbf16>
      %199 = vector.shape_cast %196 : vector<8x8xbf16> to vector<1x8x8xbf16>
      tpu.vector_store %arg6[%c0_126, %c0_127, %c24], %199 {strides = array<i32>} : memref<1x8x32xbf16, #tpu.memory_space<vmem>>, vector<1x8x8xbf16>,
    } else {
    }
    return
  }
  func.func @transform_0(%arg0: i32, %arg1: i32, %arg2: i32) -> (i32, i32, i32) {
    %c0_i32 = arith.constant 0 : i32
    %c0_i32_0 = arith.constant 0 : i32
    return %arg0, %arg1, %c0_i32 : i32, i32, i32
  }
  func.func @transform_1(%arg0: i32, %arg1: i32, %arg2: i32) -> (i32, i32, i32) {
    %c0_i32 = arith.constant 0 : i32
    %c0_i32_0 = arith.constant 0 : i32
    return %arg0, %arg2, %c0_i32 : i32, i32, i32
  }
  func.func @transform_2(%arg0: i32, %arg1: i32, %arg2: i32) -> (i32, i32, i32) {
    %c0_i32 = arith.constant 0 : i32
    %c0_i32_0 = arith.constant 0 : i32
    return %arg0, %arg2, %c0_i32 : i32, i32, i32
  }
  func.func @transform_3(%arg0: i32, %arg1: i32, %arg2: i32) -> (i32, i32, i32) {
    %c0_i32 = arith.constant 0 : i32
    %c0_i32_0 = arith.constant 0 : i32
    return %arg0, %arg1, %c0_i32 : i32, i32, i32
  }
}

</mosaic_0001>

<llo_original>
// kernel: _lambda_.3
$region0: #{_lambda_.3}
  #allocation0 [shape = 'u32[]', space=smem, size = 0x4, offset = 0x4, fixed_abs, tag = 'smem constant byte address 0x4 - core index']
  #allocation1 [shape = 'u32[144,128]{1,0:T(1,128)}', space=vmem, size = 0x12000, scoped, tag = 'internal scratch']
  %s0 = inlined_call_operand.hbm [shape: f32[16,32], index: 0, kind: input, shape index: {}]
  %s1 = inlined_call_operand.hbm [shape: bf16[32,32], index: 1, kind: input, shape index: {}]
  %s2 = inlined_call_operand.hbm [shape: f32[1,32], index: 2, kind: input, shape index: {}]
  %s3 = inlined_call_operand.hbm [shape: bf16[32,32], index: 3, kind: input, shape index: {}]
  %s4 = inlined_call_operand.hbm [shape: f32[1,32], index: 4, kind: input, shape index: {}]
  %s5 = inlined_call_operand.vmem [shape: bf16[32,32], index: 5, kind: input, shape index: {}]
  %s6 = inlined_call_operand.hbm [shape: f32[1,32], index: 6, kind: input, shape index: {}]
  %s7 = inlined_call_operand.vmem [shape: bf16[16,32], index: 7, kind: output, shape index: {0}]
  %s8 = inlined_call_operand.vmem [shape: bf16[16,32], index: 8, kind: output, shape index: {1}]
  %s9 = inlined_call_operand.vmem [shape: bf16[16,32], index: 9, kind: output, shape index: {2}]
  %10 = xla_tuple %s7, %s8, %s9
  %s11 = sld [smem:[#allocation0]]
  $region78: #{_lambda_.3} parent=0
    _
  %s13 = ssub.s32 1, %s11
  %s14 = scalar_select 0, %s13, %s11
  $region1: #{_lambda_.3} parent=0
    #allocation2 [shape = 'u8[8192]{0}', space=vmem, size = 0x2000, scoped, tag = 'input window, operand 0, single buffered']
    #allocation3 [shape = 's32[1]{0}', space=sflag, size = 0x4, scoped, tag = 'scoped memory for _lambda_.3']
    #allocation4 [shape = 'u8[8192]{0}', space=vmem, size = 0x2000, scoped, tag = 'input window, operand 1, single buffered']
    #allocation5 [shape = 's32[1]{0}', space=sflag, size = 0x4, scoped, tag = 'scoped memory for _lambda_.3']
    #allocation6 [shape = 'u8[512]{0}', space=vmem, size = 0x400, scoped, tag = 'input window, operand 2, single buffered']
    #allocation7 [shape = 'u8[8192]{0}', space=vmem, size = 0x2000, scoped, tag = 'input window, operand 3, single buffered']
    #allocation8 [shape = 's32[1]{0}', space=sflag, size = 0x4, scoped, tag = 'scoped memory for _lambda_.3']
    #allocation9 [shape = 'u8[512]{0}', space=vmem, size = 0x400, scoped, tag = 'input window, operand 4, single buffered']
    #allocation10 [shape = 'u8[512]{0}', space=vmem, size = 0x400, scoped, tag = 'input window, operand 6, single buffered']
    #allocation11 [shape = 's32[1]{0}', space=sflag, size = 0x4, scoped, tag = 'scoped memory for _lambda_.3']
    %15 = vsyncpa [#allocation3], 0
    %16 = vsyncpa [#allocation5], 0
    %17 = vsyncpa [#allocation8], 0
    %18 = vsyncpa [#allocation11], 0
    // Predicated region
    $region2: #{_lambda_.3} parent=1 // pred_check
      _
    $region3: #{_lambda_.3} parent=1 // pred_check_branch
      %20 = sbr.rel (0) target = $region5
    $region4: #{_lambda_.3} parent=1 // pred_region
      %s22 = ssub.s32 256, 256
      %23 = vsyncadd [#allocation3], %s22
      %s24 = sshll.u32 [#allocation2], 4
      %s25 = int_to_ptr.vmem [resolvable:$true] %s24
      %30 = dma.hbm_to_vmem [thread:$0]  %s0, 256, %s25, [#allocation3], 128, 128, 8
    $region5: #{_lambda_.3} parent=1 // pred_fallthru
      _
    // Predicated region
    $region6: #{_lambda_.3} parent=1 // pred_check
      _
    $region7: #{_lambda_.3} parent=1 // pred_check_branch
      %32 = sbr.rel (0) target = $region9
    $region8: #{_lambda_.3} parent=1 // pred_region
      %s34 = ssub.s32 256, 256
      %35 = vsyncadd [#allocation5], %s34
      %s36 = sshll.u32 [#allocation4], 4
      %s37 = int_to_ptr.vmem [resolvable:$true] %s36
      %42 = dma.hbm_to_vmem [thread:$0]  %s1, 256, %s37, [#allocation5], 64, 64, 4
    $region9: #{_lambda_.3} parent=1 // pred_fallthru
      _
    // Predicated region
    $region10: #{_lambda_.3} parent=1 // pred_check
      _
    $region11: #{_lambda_.3} parent=1 // pred_check_branch
      %44 = sbr.rel (0) target = $region13
    $region12: #{_lambda_.3} parent=1 // pred_region
      %s46 = ssub.s32 16, 16
      %47 = vsyncadd [#allocation5], %s46
      %s49 = sshll.u32 [#allocation6], 4
      %s50 = int_to_ptr.vmem [resolvable:$true] %s49
      %52 = dma.hbm_to_vmem [thread:$0]  %s2, 16, %s50, [#allocation5]
    $region13: #{_lambda_.3} parent=1 // pred_fallthru
      _
    // Predicated region
    $region14: #{_lambda_.3} parent=1 // pred_check
      _
    $region15: #{_lambda_.3} parent=1 // pred_check_branch
      %54 = sbr.rel (0) target = $region17
    $region16: #{_lambda_.3} parent=1 // pred_region
      %s56 = ssub.s32 256, 256
      %57 = vsyncadd [#allocation8], %s56
      %s58 = sshll.u32 [#allocation7], 4
      %s59 = int_to_ptr.vmem [resolvable:$true] %s58
      %64 = dma.hbm_to_vmem [thread:$0]  %s3, 256, %s59, [#allocation8], 64, 64, 4
    $region17: #{_lambda_.3} parent=1 // pred_fallthru
      _
    // Predicated region
    $region18: #{_lambda_.3} parent=1 // pred_check
      _
    $region19: #{_lambda_.3} parent=1 // pred_check_branch
      %66 = sbr.rel (0) target = $region21
    $region20: #{_lambda_.3} parent=1 // pred_region
      %s68 = ssub.s32 16, 16
      %69 = vsyncadd [#allocation8], %s68
      %s71 = sshll.u32 [#allocation9], 4
      %s72 = int_to_ptr.vmem [resolvable:$true] %s71
      %74 = dma.hbm_to_vmem [thread:$0]  %s4, 16, %s72, [#allocation8]
    $region21: #{_lambda_.3} parent=1 // pred_fallthru
      _
    // Predicated region
    $region22: #{_lambda_.3} parent=1 // pred_check
      _
    $region23: #{_lambda_.3} parent=1 // pred_check_branch
      %76 = sbr.rel (0) target = $region25
    $region24: #{_lambda_.3} parent=1 // pred_region
      _
    $region25: #{_lambda_.3} parent=1 // pred_fallthru
      _
    // Predicated region
    $region26: #{_lambda_.3} parent=1 // pred_check
      _
    $region27: #{_lambda_.3} parent=1 // pred_check_branch
      %78 = sbr.rel (0) target = $region29
    $region28: #{_lambda_.3} parent=1 // pred_region
      %s80 = ssub.s32 16, 16
      %81 = vsyncadd [#allocation11], %s80
      %s83 = sshll.u32 [#allocation10], 4
      %s84 = int_to_ptr.vmem [resolvable:$true] %s83
      %86 = dma.hbm_to_vmem [thread:$0]  %s6, 16, %s84, [#allocation11]
    $region29: #{_lambda_.3} parent=1 // pred_fallthru
      _
    // Predicated region
    $region30: #{_lambda_.3} parent=1 // pred_check
      _
    $region31: #{_lambda_.3} parent=1 // pred_check_branch
      %88 = sbr.rel (0) target = $region33
    $region32: #{_lambda_.3} parent=1 // pred_region
      %89 = dma.done [#allocation3], 256
    $region33: #{_lambda_.3} parent=1 // pred_fallthru
      _
    // Predicated region
    $region34: #{_lambda_.3} parent=1 // pred_check
      _
    $region35: #{_lambda_.3} parent=1 // pred_check_branch
      %91 = sbr.rel (0) target = $region37
    $region36: #{_lambda_.3} parent=1 // pred_region
      %92 = dma.done [#allocation5], 256
    $region37: #{_lambda_.3} parent=1 // pred_fallthru
      _
    // Predicated region
    $region38: #{_lambda_.3} parent=1 // pred_check
      _
    $region39: #{_lambda_.3} parent=1 // pred_check_branch
      %94 = sbr.rel (0) target = $region41
    $region40: #{_lambda_.3} parent=1 // pred_region
      %95 = dma.done [#allocation5], 16
    $region41: #{_lambda_.3} parent=1 // pred_fallthru
      _
    // Predicated region
    $region42: #{_lambda_.3} parent=1 // pred_check
      _
    $region43: #{_lambda_.3} parent=1 // pred_check_branch
      %97 = sbr.rel (0) target = $region45
    $region44: #{_lambda_.3} parent=1 // pred_region
      %98 = dma.done [#allocation8], 256
    $region45: #{_lambda_.3} parent=1 // pred_fallthru
      _
    // Predicated region
    $region46: #{_lambda_.3} parent=1 // pred_check
      _
    $region47: #{_lambda_.3} parent=1 // pred_check_branch
      %100 = sbr.rel (0) target = $region49
    $region48: #{_lambda_.3} parent=1 // pred_region
      %101 = dma.done [#allocation8], 16
    $region49: #{_lambda_.3} parent=1 // pred_fallthru
      _
    // Predicated region
    $region50: #{_lambda_.3} parent=1 // pred_check
      _
    $region51: #{_lambda_.3} parent=1 // pred_check_branch
      %103 = sbr.rel (0) target = $region53
    $region52: #{_lambda_.3} parent=1 // pred_region
      %104 = dma.done [#allocation11], 16
    $region53: #{_lambda_.3} parent=1 // pred_fallthru
      _
    %v106 = vld [vmem:[#allocation2] sm:$0xff]
    %v107 = vld [vmem:[#allocation2 + $0x8] sm:$0xff]
    %v108 = vpack.c.bf16 %v107, %v106
    %v109 = vld [vmem:[#allocation4] sm:$0xf]
    %v110 = vld [vmem:[#allocation4 + $0x4] sm:$0xf]
    %v111 = vld [vmem:[#allocation4 + $0x8] sm:$0xf]
    %v112 = vld [vmem:[#allocation4 + $0xc] sm:$0xf]
    %v113 = vld [vmem:[#allocation6] sm:$0x1]
    %v115 = vlaneseq
    %v116 = vshrl.u32 %v115, 7
    %v117 = vsub.s32 0, %v116
    %v118 = vrot.slane %v113, %v117
    %v124 = vunpack.c.l.b16 %v109
    %v125 = vunpack.c.l.b16 %v110
    %v126 = vunpack.c.l.b16 %v111
    %v127 = vunpack.c.l.b16 %v112
    %v128 = vpack.c.b16 %v125, %v124
    %v129 = vpack.c.b16 %v127, %v126
    %vm132 = vcmask 261120
    %v134 = vsel %vm132, %v108, 0
    %136 = vmatprep.subr.bf16.mxu0 0
    %137 = vmatpush1.bf16.msra.mxu0 0
    %138 = vmatprep.subr.bf16.mxu0 0
    %139 = vmatpush1.bf16.msra.mxu0 0
    %140 = vmatprep.subr.bf16.mxu0 0
    %141 = vmatpush1.bf16.msra.mxu0 0
    %142 = vmatprep.subr.bf16.mxu0 0
    %143 = vmatpush1.bf16.msra.mxu0 0
    %144 = vmatprep.subr.bf16.mxu0 0
    %145 = vmatpush1.bf16.msra.mxu0 0
    %146 = vmatprep.subr.bf16.mxu0 0
    %147 = vmatpush1.bf16.msra.mxu0 0
    %148 = vmatprep.subr.bf16.mxu0 0
    %149 = vmatpush1.bf16.msra.mxu0 %v129
    %150 = vmatprep.subr.bf16.mxu0 0
    %151 = vmatpush1.bf16.msra.mxu0 %v128
    %152 = vmatprep.subr.bf16.mxu0 0
    %153 = vmatpush2.bf16.msra.mxu0 0
    %154 = vmatprep.subr.bf16.mxu0 0
    %155 = vmatpush2.bf16.msra.mxu0 0
    %156 = vmatprep.subr.bf16.mxu0 0
    %157 = vmatpush2.bf16.msra.mxu0 0
    %158 = vmatprep.subr.bf16.mxu0 0
    %159 = vmatpush2.bf16.msra.mxu0 0
    %160 = vmatprep.subr.bf16.mxu0 0
    %161 = vmatpush2.bf16.msra.mxu0 0
    %162 = vmatprep.subr.bf16.mxu0 0
    %163 = vmatpush2.bf16.msra.mxu0 0
    %164 = vmatprep.subr.bf16.mxu0 0
    %165 = vmatpush2.bf16.msra.mxu0 0
    %166 = vmatprep.subr.bf16.mxu0 0
    %167 = vmatpush2.bf16.msra.mxu0 0
    %168 = vmatprep.mubr.bf16.mxu0 0
    %169 = vmatmul.mubr.bf16.gmra.mxu0 %v134
    %v170 = vpop.f32.mrf.mxu0
    %v171 = vadd.f32 %v118, %v170
    %v172 = vpop.f32.mrf.mxu0
    %v173 = vpop.f32.mrf.mxu0
    %v174 = vadd.f32 %v118, %v173
    %v175 = vpop.f32.mrf.mxu0
    %176 = vdwg.mxu0
    %v177 = vmul.f32 %v171, 0.35355338
    %v178 = vmul.f32 %v174, 0.35355338
    %v179 = vpack.c.bf16 %v178, %v177
    %v181 = vunpack.c.l.b16 %v179
    %v182 = vunpack.c.h.b16 %v179
    %v183 = vpack.c.b16 %v181, %v181
    %v184 = vpack.c.b16 %v182, %v182
    %vm187 = vcmask 257024
    %188 = vst.msk [vmem:[%s7] sm:$0xf] %vm187, %v183
    %189 = vst.msk [vmem:[%s7 + $0x4] sm:$0xf] %vm187, %v184
    %v190 = vld [vmem:[#allocation7] sm:$0xf]
    %v191 = vld [vmem:[#allocation7 + $0x4] sm:$0xf]
    %v192 = vld [vmem:[#allocation7 + $0x8] sm:$0xf]
    %v193 = vld [vmem:[#allocation7 + $0xc] sm:$0xf]
    %v194 = vld [vmem:[#allocation9] sm:$0x1]
    %v196 = vlaneseq
    %v197 = vshrl.u32 %v196, 7
    %v198 = vsub.s32 0, %v197
    %v199 = vrot.slane %v194, %v198
    %v205 = vunpack.c.l.b16 %v190
    %v206 = vunpack.c.l.b16 %v191
    %v207 = vunpack.c.l.b16 %v192
    %v208 = vunpack.c.l.b16 %v193
    %v209 = vpack.c.b16 %v206, %v205
    %v210 = vpack.c.b16 %v208, %v207
    %213 = vmatprep.subr.bf16.mxu0 0
    %214 = vmatpush1.bf16.msra.mxu0 0
    %215 = vmatprep.subr.bf16.mxu0 0
    %216 = vmatpush1.bf16.msra.mxu0 0
    %217 = vmatprep.subr.bf16.mxu0 0
    %218 = vmatpush1.bf16.msra.mxu0 0
    %219 = vmatprep.subr.bf16.mxu0 0
    %220 = vmatpush1.bf16.msra.mxu0 0
    %221 = vmatprep.subr.bf16.mxu0 0
    %222 = vmatpush1.bf16.msra.mxu0 0
    %223 = vmatprep.subr.bf16.mxu0 0
    %224 = vmatpush1.bf16.msra.mxu0 0
    %225 = vmatprep.subr.bf16.mxu0 0
    %226 = vmatpush1.bf16.msra.mxu0 %v210
    %227 = vmatprep.subr.bf16.mxu0 0
    %228 = vmatpush1.bf16.msra.mxu0 %v209
    %229 = vmatprep.subr.bf16.mxu0 0
    %230 = vmatpush2.bf16.msra.mxu0 0
    %231 = vmatprep.subr.bf16.mxu0 0
    %232 = vmatpush2.bf16.msra.mxu0 0
    %233 = vmatprep.subr.bf16.mxu0 0
    %234 = vmatpush2.bf16.msra.mxu0 0
    %235 = vmatprep.subr.bf16.mxu0 0
    %236 = vmatpush2.bf16.msra.mxu0 0
    %237 = vmatprep.subr.bf16.mxu0 0
    %238 = vmatpush2.bf16.msra.mxu0 0
    %239 = vmatprep.subr.bf16.mxu0 0
    %240 = vmatpush2.bf16.msra.mxu0 0
    %241 = vmatprep.subr.bf16.mxu0 0
    %242 = vmatpush2.bf16.msra.mxu0 0
    %243 = vmatprep.subr.bf16.mxu0 0
    %244 = vmatpush2.bf16.msra.mxu0 0
    %245 = vmatprep.mubr.bf16.mxu0 0
    %246 = vmatmul.mubr.bf16.gmra.mxu0 %v134
    %v247 = vpop.f32.mrf.mxu0
    %v248 = vadd.f32 %v199, %v247
    %v249 = vpop.f32.mrf.mxu0
    %v250 = vpop.f32.mrf.mxu0
    %v251 = vadd.f32 %v199, %v250
    %v252 = vpop.f32.mrf.mxu0
    %253 = vdwg.mxu0
    %v254 = vpack.c.bf16 %v251, %v248
    %v256 = vunpack.c.l.b16 %v254
    %v257 = vunpack.c.h.b16 %v254
    %v258 = vpack.c.b16 %v256, %v256
    %v259 = vpack.c.b16 %v257, %v257
    %262 = vst.msk [vmem:[%s8] sm:$0xf] %vm187, %v258
    %263 = vst.msk [vmem:[%s8 + $0x4] sm:$0xf] %vm187, %v259
    %v264 = vld [vmem:[%s5] sm:$0xf]
    %v265 = vld [vmem:[%s5 + $0x4] sm:$0xf]
    %v266 = vld [vmem:[%s5 + $0x8] sm:$0xf]
    %v267 = vld [vmem:[%s5 + $0xc] sm:$0xf]
    %v268 = vld [vmem:[#allocation10] sm:$0x1]
    %v270 = vlaneseq
    %v271 = vshrl.u32 %v270, 7
    %v272 = vsub.s32 0, %v271
    %v273 = vrot.slane %v268, %v272
    %v279 = vunpack.c.l.b16 %v264
    %v280 = vunpack.c.l.b16 %v265
    %v281 = vunpack.c.l.b16 %v266
    %v282 = vunpack.c.l.b16 %v267
    %v283 = vpack.c.b16 %v280, %v279
    %v284 = vpack.c.b16 %v282, %v281
    %287 = vmatprep.subr.bf16.mxu0 0
    %288 = vmatpush1.bf16.msra.mxu0 0
    %289 = vmatprep.subr.bf16.mxu0 0
    %290 = vmatpush1.bf16.msra.mxu0 0
    %291 = vmatprep.subr.bf16.mxu0 0
    %292 = vmatpush1.bf16.msra.mxu0 0
    %293 = vmatprep.subr.bf16.mxu0 0
    %294 = vmatpush1.bf16.msra.mxu0 0
    %295 = vmatprep.subr.bf16.mxu0 0
    %296 = vmatpush1.bf16.msra.mxu0 0
    %297 = vmatprep.subr.bf16.mxu0 0
    %298 = vmatpush1.bf16.msra.mxu0 0
    %299 = vmatprep.subr.bf16.mxu0 0
    %300 = vmatpush1.bf16.msra.mxu0 %v284
    %301 = vmatprep.subr.bf16.mxu0 0
    %302 = vmatpush1.bf16.msra.mxu0 %v283
    %303 = vmatprep.subr.bf16.mxu0 0
    %304 = vmatpush2.bf16.msra.mxu0 0
    %305 = vmatprep.subr.bf16.mxu0 0
    %306 = vmatpush2.bf16.msra.mxu0 0
    %307 = vmatprep.subr.bf16.mxu0 0
    %308 = vmatpush2.bf16.msra.mxu0 0
    %309 = vmatprep.subr.bf16.mxu0 0
    %310 = vmatpush2.bf16.msra.mxu0 0
    %311 = vmatprep.subr.bf16.mxu0 0
    %312 = vmatpush2.bf16.msra.mxu0 0
    %313 = vmatprep.subr.bf16.mxu0 0
    %314 = vmatpush2.bf16.msra.mxu0 0
    %315 = vmatprep.subr.bf16.mxu0 0
    %316 = vmatpush2.bf16.msra.mxu0 0
    %317 = vmatprep.subr.bf16.mxu0 0
    %318 = vmatpush2.bf16.msra.mxu0 0
    %319 = vmatprep.mubr.bf16.mxu0 0
    %320 = vmatmul.mubr.bf16.gmra.mxu0 %v134
    %v321 = vpop.f32.mrf.mxu0
    %v322 = vadd.f32 %v273, %v321
    %v323 = vpop.f32.mrf.mxu0
    %v324 = vpop.f32.mrf.mxu0
    %v325 = vadd.f32 %v273, %v324
    %v326 = vpop.f32.mrf.mxu0
    %327 = vdwg.mxu0
    %v328 = vpack.c.bf16 %v325, %v322
    %v330 = vunpack.c.l.b16 %v328
    %v331 = vunpack.c.h.b16 %v328
    %v332 = vpack.c.b16 %v330, %v330
    %v333 = vpack.c.b16 %v331, %v331
    %336 = vst.msk [vmem:[%s9] sm:$0xf] %vm187, %v332
    %337 = vst.msk [vmem:[%s9 + $0x4] sm:$0xf] %vm187, %v333
    // Predicated region
    $region54: #{_lambda_.3} parent=1 // pred_check
      _
    $region55: #{_lambda_.3} parent=1 // pred_check_branch
      %339 = sbr.rel (0) target = $region57
    $region56: #{_lambda_.3} parent=1 // pred_region
      _
    $region57: #{_lambda_.3} parent=1 // pred_fallthru
      _
    // Predicated region
    $region58: #{_lambda_.3} parent=1 // pred_check
      _
    $region59: #{_lambda_.3} parent=1 // pred_check_branch
      %341 = sbr.rel (0) target = $region61
    $region60: #{_lambda_.3} parent=1 // pred_region
      _
    $region61: #{_lambda_.3} parent=1 // pred_fallthru
      _
    // Predicated region
    $region62: #{_lambda_.3} parent=1 // pred_check
      _
    $region63: #{_lambda_.3} parent=1 // pred_check_branch
      %343 = sbr.rel (0) target = $region65
    $region64: #{_lambda_.3} parent=1 // pred_region
      _
    $region65: #{_lambda_.3} parent=1 // pred_fallthru
      _
    // Predicated region
    $region66: #{_lambda_.3} parent=1 // pred_check
      _
    $region67: #{_lambda_.3} parent=1 // pred_check_branch
      %345 = sbr.rel (0) target = $region69
    $region68: #{_lambda_.3} parent=1 // pred_region
      _
    $region69: #{_lambda_.3} parent=1 // pred_fallthru
      _
    // Predicated region
    $region70: #{_lambda_.3} parent=1 // pred_check
      _
    $region71: #{_lambda_.3} parent=1 // pred_check_branch
      %347 = sbr.rel (0) target = $region73
    $region72: #{_lambda_.3} parent=1 // pred_region
      _
    $region73: #{_lambda_.3} parent=1 // pred_fallthru
      _
    // Predicated region
    $region74: #{_lambda_.3} parent=1 // pred_check
      _
    $region75: #{_lambda_.3} parent=1 // pred_check_branch
      %349 = sbr.rel (0) target = $region77
    $region76: #{_lambda_.3} parent=1 // pred_region
      _
    $region77: #{_lambda_.3} parent=1 // pred_fallthru
      _
    %350 = vsyncpa [#allocation3], 1
    %351 = vsyncpa [#allocation5], 1
    %352 = vsyncpa [#allocation8], 1
    %353 = vsyncpa [#allocation11], 1

// kernel: _lambda_.5
$region0: #{_lambda_.5}
  #allocation0 [shape = 'u32[]', space=smem, size = 0x4, offset = 0x4, fixed_abs, tag = 'smem constant byte address 0x4 - core index']
  #allocation1 [shape = 'u32[144,128]{1,0:T(1,128)}', space=vmem, size = 0x12000, scoped, tag = 'internal scratch']
  %s0 = inlined_call_operand.vmem [shape: bf16[16,32], index: 0, kind: input, shape index: {}]
  %s1 = inlined_call_operand.vmem [shape: bf16[32,32], index: 1, kind: input, shape index: {}]
  %s2 = inlined_call_operand.vmem [shape: f32[1,32], index: 2, kind: input, shape index: {}]
  %s3 = inlined_call_operand.hbm [shape: f32[16,32], index: 3, kind: output, shape index: {}]
  %s4 = sld [smem:[#allocation0]]
  $region22: #{_lambda_.5} parent=0
    _
  %s6 = ssub.s32 1, %s4
  %s7 = scalar_select 0, %s6, %s4
  $region1: #{_lambda_.5} parent=0
    #allocation2 [shape = 'u8[8192]{0}', space=vmem, size = 0x2000, scoped, tag = 'output window, operand 0, single buffered']
    #allocation3 [shape = 's32[1]{0}', space=sflag, size = 0x4, scoped, tag = 'scoped memory for _lambda_.5']
    %8 = vsyncpa [#allocation3], 0
    // Predicated region
    $region2: #{_lambda_.5} parent=1 // pred_check
      _
    $region3: #{_lambda_.5} parent=1 // pred_check_branch
      %10 = sbr.rel (0) target = $region5
    $region4: #{_lambda_.5} parent=1 // pred_region
      _
    $region5: #{_lambda_.5} parent=1 // pred_fallthru
      _
    // Predicated region
    $region6: #{_lambda_.5} parent=1 // pred_check
      _
    $region7: #{_lambda_.5} parent=1 // pred_check_branch
      %12 = sbr.rel (0) target = $region9
    $region8: #{_lambda_.5} parent=1 // pred_region
      _
    $region9: #{_lambda_.5} parent=1 // pred_fallthru
      _
    // Predicated region
    $region10: #{_lambda_.5} parent=1 // pred_check
      _
    $region11: #{_lambda_.5} parent=1 // pred_check_branch
      %14 = sbr.rel (0) target = $region13
    $region12: #{_lambda_.5} parent=1 // pred_region
      _
    $region13: #{_lambda_.5} parent=1 // pred_fallthru
      _
    %v16 = vld [vmem:[%s0] sm:$0xf]
    %v17 = vld [vmem:[%s0 + $0x4] sm:$0xf]
    %v18 = vld [vmem:[%s1] sm:$0xf]
    %v19 = vld [vmem:[%s1 + $0x4] sm:$0xf]
    %v20 = vld [vmem:[%s1 + $0x8] sm:$0xf]
    %v21 = vld [vmem:[%s1 + $0xc] sm:$0xf]
    %v22 = vld [vmem:[%s2] sm:$0x1]
    %v24 = vlaneseq
    %v25 = vshrl.u32 %v24, 7
    %v26 = vsub.s32 0, %v25
    %v27 = vrot.slane %v22, %v26
    %v31 = vunpack.c.l.b16 %v16
    %v32 = vunpack.c.l.b16 %v17
    %v33 = vpack.c.b16 %v32, %v31
    %v38 = vunpack.c.l.b16 %v18
    %v39 = vunpack.c.l.b16 %v19
    %v40 = vunpack.c.l.b16 %v20
    %v41 = vunpack.c.l.b16 %v21
    %v42 = vpack.c.b16 %v39, %v38
    %v43 = vpack.c.b16 %v41, %v40
    %vm46 = vcmask 261120
    %v48 = vsel %vm46, %v33, 0
    %50 = vmatprep.subr.bf16.mxu0 0
    %51 = vmatpush1.bf16.msra.mxu0 0
    %52 = vmatprep.subr.bf16.mxu0 0
    %53 = vmatpush1.bf16.msra.mxu0 0
    %54 = vmatprep.subr.bf16.mxu0 0
    %55 = vmatpush1.bf16.msra.mxu0 0
    %56 = vmatprep.subr.bf16.mxu0 0
    %57 = vmatpush1.bf16.msra.mxu0 0
    %58 = vmatprep.subr.bf16.mxu0 0
    %59 = vmatpush1.bf16.msra.mxu0 0
    %60 = vmatprep.subr.bf16.mxu0 0
    %61 = vmatpush1.bf16.msra.mxu0 0
    %62 = vmatprep.subr.bf16.mxu0 0
    %63 = vmatpush1.bf16.msra.mxu0 %v43
    %64 = vmatprep.subr.bf16.mxu0 0
    %65 = vmatpush1.bf16.msra.mxu0 %v42
    %66 = vmatprep.subr.bf16.mxu0 0
    %67 = vmatpush2.bf16.msra.mxu0 0
    %68 = vmatprep.subr.bf16.mxu0 0
    %69 = vmatpush2.bf16.msra.mxu0 0
    %70 = vmatprep.subr.bf16.mxu0 0
    %71 = vmatpush2.bf16.msra.mxu0 0
    %72 = vmatprep.subr.bf16.mxu0 0
    %73 = vmatpush2.bf16.msra.mxu0 0
    %74 = vmatprep.subr.bf16.mxu0 0
    %75 = vmatpush2.bf16.msra.mxu0 0
    %76 = vmatprep.subr.bf16.mxu0 0
    %77 = vmatpush2.bf16.msra.mxu0 0
    %78 = vmatprep.subr.bf16.mxu0 0
    %79 = vmatpush2.bf16.msra.mxu0 0
    %80 = vmatprep.subr.bf16.mxu0 0
    %81 = vmatpush2.bf16.msra.mxu0 0
    %82 = vmatprep.mubr.bf16.mxu0 0
    %83 = vmatmul.mubr.bf16.gmra.mxu0 %v48
    %v84 = vpop.f32.mrf.mxu0
    %v85 = vadd.f32 %v27, %v84
    %v86 = vpop.f32.mrf.mxu0
    %v87 = vpop.f32.mrf.mxu0
    %v88 = vadd.f32 %v27, %v87
    %v89 = vpop.f32.mrf.mxu0
    %90 = vdwg.mxu0
    %91 = vst.msk [vmem:[#allocation2] sm:$0xff] %vm46, %v85
    %92 = vst.msk [vmem:[#allocation2 + $0x8] sm:$0xff] %vm46, %v88
    // Predicated region
    $region14: #{_lambda_.5} parent=1 // pred_check
      _
    $region15: #{_lambda_.5} parent=1 // pred_check_branch
      %94 = sbr.rel (0) target = $region17
    $region16: #{_lambda_.5} parent=1 // pred_region
      %s96 = ssub.s32 256, 256
      %97 = vsyncadd [#allocation3], %s96
      %s98 = sshll.u32 [#allocation2], 4
      %s99 = int_to_ptr.vmem [resolvable:$true] %s98
      %104 = dma.vmem_to_hbm [thread:$0]  %s99, 256, %s3, [#allocation3], 128, 128, 8
    $region17: #{_lambda_.5} parent=1 // pred_fallthru
      _
    // Predicated region
    $region18: #{_lambda_.5} parent=1 // pred_check
      _
    $region19: #{_lambda_.5} parent=1 // pred_check_branch
      %106 = sbr.rel (0) target = $region21
    $region20: #{_lambda_.5} parent=1 // pred_region
      %107 = dma.done [#allocation3], 256
    $region21: #{_lambda_.5} parent=1 // pred_fallthru
      _
    %108 = vsyncpa [#allocation3], 1

// kernel: _lambda_.4
$region0: #{_lambda_.4}
  #allocation0 [shape = 'u32[]', space=smem, size = 0x4, offset = 0x4, fixed_abs, tag = 'smem constant byte address 0x4 - core index']
  #allocation1 [shape = 'u32[144,128]{1,0:T(1,128)}', space=vmem, size = 0x12000, scoped, tag = 'internal scratch']
  #allocation2 [shape = 'f32[4,8,1]{2,1,0:T(8,128)}', space=vmem, size = 0x4000, scoped, tag = 'scratch operand']
  #allocation3 [shape = 'f32[4,8,1]{2,1,0:T(8,128)}', space=vmem, size = 0x4000, scoped, tag = 'scratch operand']
  #allocation4 [shape = 'f32[4,8,8]{2,1,0:T(8,128)}', space=vmem, size = 0x4000, scoped, tag = 'scratch operand']
  %s0 = inlined_call_operand.vmem [shape: bf16[2,8,32], index: 0, kind: input, shape index: {}]
  %s1 = inlined_call_operand.vmem [shape: bf16[2,8,32], index: 1, kind: input, shape index: {}]
  %s2 = inlined_call_operand.vmem [shape: bf16[2,8,32], index: 2, kind: input, shape index: {}]
  %s3 = inlined_call_operand.vmem [shape: bf16[2,8,32], index: 3, kind: output, shape index: {}]
  %s4 = sld [smem:[#allocation0]]
  $region53: #{_lambda_.4} parent=0
    _
  %s6 = ssub.s32 1, %s4
  %s7 = scalar_select 0, %s6, %s4
  loop: start=0, step=1, limit=4
  $region2: #{_lambda_.4} parent=0 // loop_pre_header
    _
  $region3: #{_lambda_.4} parent=0 // loop_header
    %s9 = sphi 0, %s13
    %p10 = scmp.ge.s32.totalorder %s9, 4
    %s16 = sphi 0, %s35
    %s17 = sphi 0, %s31
    %s18 = sphi 0, %s27
    %s19 = sphi 0, %s16
    %s20 = sphi 0, %s17
    %s21 = sphi 0, %s18
    %s22 = sphi 0, %s19
    %s23 = sphi 0, %s20
    %s24 = sphi 0, %s21
    %s40 = sphi 0, %s42
    %s43 = sphi 0, %s40
    %s44 = sphi 0, %s43
    %s60 = sphi 0, %s44
    %s68 = sphi 0, %s70
    %s71 = sphi 0, %s68
    %s72 = sphi 0, %s71
    %s88 = sphi 0, %s72
    %s96 = sphi 0, %s98
    %s99 = sphi 0, %s96
    %s100 = sphi 0, %s99
    %s116 = sphi 0, %s100
    %s124 = sphi 0, %s126
    %s127 = sphi 0, %s124
    %s128 = sphi 0, %s127
    %s144 = sphi 0, %s128
  $region4: #{_lambda_.4} parent=0 // loop_header_branch
    %12 = sbr.rel (%p10) target = $region8
  $region5: #{_lambda_.4} parent=0 // loop_body
    %s14 = ssub.s32 %s9, 1
    %s15 = ssub.s32 %s9, 2
    %s25 = sadd.s32 1, %s18
    %p26 = scmp.ge.s32.totalorder %s25, 1
    %s27 = scalar_select %p26, 0, %s25
    %s28 = sadd.s32 1, %s17
    %s29 = scalar_select %p26, %s28, %s17
    %p30 = scmp.ge.s32.totalorder %s29, 1
    %s31 = scalar_select %p30, 0, %s29
    %s32 = sadd.s32 1, %s16
    %s33 = scalar_select %p30, %s32, %s16
    %p34 = scmp.ge.s32.totalorder %s33, 2
    %s35 = scalar_select %p34, 0, %s33
    %s36 = ssub.s32 %s16, %s35
    %s37 = ssub.s32 %s17, %s31
    %s38 = sor.u32 %s36, %s37
    %p39 = scmp.eq.s32.totalorder %s38, 0
    %s41 = sadd.s32 %s40, 1
    %s42 = scalar_select %p39, %s40, %s41
    %p45 = pneg %p39
    %p46 = scmp.eq.s32.totalorder %s9, 1
    %p47 = por %p45, %p46
    %p48 = scmp.ne.s32.totalorder %s40, %s43
    %p49 = scmp.eq.s32.totalorder %s9, 0
    %p50 = por %p48, %p49
    %p51 = scmp.ne.s32.totalorder %s40, %s43
    %p52 = scmp.eq.s32.totalorder %s14, 1
    %p53 = por %p51, %p52
    %p54 = scmp.ne.s32.totalorder %s43, %s44
    %p55 = scmp.eq.s32.totalorder %s14, 0
    %p56 = por %p54, %p55
    %p57 = scmp.ne.s32.totalorder %s43, %s44
    %p58 = scmp.eq.s32.totalorder %s15, 1
    %p59 = por %p57, %p58
    %p61 = scmp.ne.s32.totalorder %s44, %s60
    %p62 = scmp.eq.s32.totalorder %s15, 0
    %p63 = por %p61, %p62
    %s64 = ssub.s32 %s16, %s35
    %s65 = ssub.s32 %s18, %s27
    %s66 = sor.u32 %s64, %s65
    %p67 = scmp.eq.s32.totalorder %s66, 0
    %s69 = sadd.s32 %s68, 1
    %s70 = scalar_select %p67, %s68, %s69
    %p73 = pneg %p67
    %p74 = scmp.eq.s32.totalorder %s9, 1
    %p75 = por %p73, %p74
    %p76 = scmp.ne.s32.totalorder %s68, %s71
    %p77 = scmp.eq.s32.totalorder %s9, 0
    %p78 = por %p76, %p77
    %p79 = scmp.ne.s32.totalorder %s68, %s71
    %p80 = scmp.eq.s32.totalorder %s14, 1
    %p81 = por %p79, %p80
    %p82 = scmp.ne.s32.totalorder %s71, %s72
    %p83 = scmp.eq.s32.totalorder %s14, 0
    %p84 = por %p82, %p83
    %p85 = scmp.ne.s32.totalorder %s71, %s72
    %p86 = scmp.eq.s32.totalorder %s15, 1
    %p87 = por %p85, %p86
    %p89 = scmp.ne.s32.totalorder %s72, %s88
    %p90 = scmp.eq.s32.totalorder %s15, 0
    %p91 = por %p89, %p90
    %s92 = ssub.s32 %s16, %s35
    %s93 = ssub.s32 %s18, %s27
    %s94 = sor.u32 %s92, %s93
    %p95 = scmp.eq.s32.totalorder %s94, 0
    %s97 = sadd.s32 %s96, 1
    %s98 = scalar_select %p95, %s96, %s97
    %p101 = pneg %p95
    %p102 = scmp.eq.s32.totalorder %s9, 1
    %p103 = por %p101, %p102
    %p104 = scmp.ne.s32.totalorder %s96, %s99
    %p105 = scmp.eq.s32.totalorder %s9, 0
    %p106 = por %p104, %p105
    %p107 = scmp.ne.s32.totalorder %s96, %s99
    %p108 = scmp.eq.s32.totalorder %s14, 1
    %p109 = por %p107, %p108
    %p110 = scmp.ne.s32.totalorder %s99, %s100
    %p111 = scmp.eq.s32.totalorder %s14, 0
    %p112 = por %p110, %p111
    %p113 = scmp.ne.s32.totalorder %s99, %s100
    %p114 = scmp.eq.s32.totalorder %s15, 1
    %p115 = por %p113, %p114
    %p117 = scmp.ne.s32.totalorder %s100, %s116
    %p118 = scmp.eq.s32.totalorder %s15, 0
    %p119 = por %p117, %p118
    %s120 = ssub.s32 %s16, %s35
    %s121 = ssub.s32 %s17, %s31
    %s122 = sor.u32 %s120, %s121
    %p123 = scmp.eq.s32.totalorder %s122, 0
    %s125 = sadd.s32 %s124, 1
    %s126 = scalar_select %p123, %s124, %s125
    %p129 = pneg %p123
    %p130 = scmp.eq.s32.totalorder %s9, 1
    %p131 = por %p129, %p130
    %p132 = scmp.ne.s32.totalorder %s124, %s127
    %p133 = scmp.eq.s32.totalorder %s9, 0
    %p134 = por %p132, %p133
    %p135 = scmp.ne.s32.totalorder %s124, %s127
    %p136 = scmp.eq.s32.totalorder %s14, 1
    %p137 = por %p135, %p136
    %p138 = scmp.ne.s32.totalorder %s127, %s128
    %p139 = scmp.eq.s32.totalorder %s14, 0
    %p140 = por %p138, %p139
    %p141 = scmp.ne.s32.totalorder %s127, %s128
    %p142 = scmp.eq.s32.totalorder %s15, 1
    %p143 = por %p141, %p142
    %p145 = scmp.ne.s32.totalorder %s128, %s144
    %p146 = scmp.eq.s32.totalorder %s15, 0
    %p147 = por %p145, %p146
    %p148 = scmp.le.s32.totalorder 1, %s9
    %p149 = scmp.lt.s32.totalorder %s9, 3
    %p150 = pnand %p148, %p149
    %p151 = pneg %p150
    // Predicated region
    $region9: #{_lambda_.4} parent=5 // pred_check
      _
    $region10: #{_lambda_.4} parent=5 // pred_check_branch
      %153 = sbr.rel (%p150) target = $region12
    $region11: #{_lambda_.4} parent=5 // pred_region
      %s154 = ssub.s32 %s9, 1
    $region12: #{_lambda_.4} parent=5 // pred_fallthru
      _
    %p155 = scmp.lt.s32.totalorder %s9, 2
    // Predicated region
    $region13: #{_lambda_.4} parent=5 // pred_check
      %p156 = pneg %p155
    $region14: #{_lambda_.4} parent=5 // pred_check_branch
      %158 = sbr.rel (%p156) target = $region16
    $region15: #{_lambda_.4} parent=5 // pred_region
      // Predicated region
      $region17: #{_lambda_.4} parent=15 // pred_check
        %p159 = pneg %p50
      $region18: #{_lambda_.4} parent=15 // pred_check_branch
        %161 = sbr.rel (%p159) target = $region20
      $region19: #{_lambda_.4} parent=15 // pred_region
        %p162 = scmp.lt.s32.totalorder %s16, 1
        %s163 = scalar_select %p162, %s16, 1
        %p164 = scmp.lt.s32.totalorder %s17, 0
        %s165 = scalar_select %p164, %s17, 0
        %s166 = sadd.s32 %s165, %s163
        %s167 = smul.addr %s166, 4
        %s168 = scalar_lea.vmem %s0, %s167
      $region20: #{_lambda_.4} parent=15 // pred_fallthru
        _
      // Predicated region
      $region21: #{_lambda_.4} parent=15 // pred_check
        %p169 = pneg %p78
      $region22: #{_lambda_.4} parent=15 // pred_check_branch
        %171 = sbr.rel (%p169) target = $region24
      $region23: #{_lambda_.4} parent=15 // pred_region
        %p172 = scmp.lt.s32.totalorder %s16, 1
        %s173 = scalar_select %p172, %s16, 1
        %p174 = scmp.lt.s32.totalorder %s18, 0
        %s175 = scalar_select %p174, %s18, 0
        %s176 = sadd.s32 %s175, %s173
        %s177 = smul.addr %s176, 4
        %s178 = scalar_lea.vmem %s1, %s177
      $region24: #{_lambda_.4} parent=15 // pred_fallthru
        _
      // Predicated region
      $region25: #{_lambda_.4} parent=15 // pred_check
        %p179 = pneg %p106
      $region26: #{_lambda_.4} parent=15 // pred_check_branch
        %181 = sbr.rel (%p179) target = $region28
      $region27: #{_lambda_.4} parent=15 // pred_region
        %p182 = scmp.lt.s32.totalorder %s16, 1
        %s183 = scalar_select %p182, %s16, 1
        %p184 = scmp.lt.s32.totalorder %s18, 0
        %s185 = scalar_select %p184, %s18, 0
        %s186 = sadd.s32 %s185, %s183
        %s187 = smul.addr %s186, 4
        %s188 = scalar_lea.vmem %s2, %s187
      $region28: #{_lambda_.4} parent=15 // pred_fallthru
        _
    $region16: #{_lambda_.4} parent=5 // pred_fallthru
      _
    %p189 = scmp.le.s32.totalorder 1, %s9
    %p190 = scmp.lt.s32.totalorder %s9, 3
    %p191 = pnand %p189, %p190
    %p192 = pneg %p191
    // Predicated region
    $region29: #{_lambda_.4} parent=5 // pred_check
      _
    $region30: #{_lambda_.4} parent=5 // pred_check_branch
      %194 = sbr.rel (%p191) target = $region32
    $region31: #{_lambda_.4} parent=5 // pred_region
      %s195 = ssub.s32 %s9, 1
      %p196 = scmp.lt.s32.totalorder %s19, 1
      %s197 = scalar_select %p196, %s19, 1
      %p198 = scmp.lt.s32.totalorder %s20, 0
      %s199 = scalar_select %p198, %s20, 0
      %s200 = sadd.s32 %s199, %s197
      %s201 = smul.addr %s200, 4
      %s202 = scalar_lea.vmem %s0, %s201
      %p203 = pneg %p56
      %p204 = pneg %p53
      %p205 = scmp.lt.s32.totalorder %s19, 1
      %s206 = scalar_select %p205, %s19, 1
      %p207 = scmp.lt.s32.totalorder %s21, 0
      %s208 = scalar_select %p207, %s21, 0
      %s209 = sadd.s32 %s208, %s206
      %s210 = smul.addr %s209, 4
      %s211 = scalar_lea.vmem %s1, %s210
      %p212 = pneg %p84
      %p213 = pneg %p81
      %p214 = scmp.lt.s32.totalorder %s19, 1
      %s215 = scalar_select %p214, %s19, 1
      %p216 = scmp.lt.s32.totalorder %s21, 0
      %s217 = scalar_select %p216, %s21, 0
      %s218 = sadd.s32 %s217, %s215
      %s219 = smul.addr %s218, 4
      %s220 = scalar_lea.vmem %s2, %s219
      %p221 = pneg %p112
      %p222 = pneg %p109
      %p223 = pneg %p140
      %p224 = pneg %p137
      %p225 = scmp.lt.s32.totalorder %s19, 1
      %s226 = scalar_select %p225, %s19, 1
      %p227 = scmp.lt.s32.totalorder %s20, 0
      %s228 = scalar_select %p227, %s20, 0
      %s229 = sadd.s32 %s228, %s226
      %s230 = smul.addr %s229, 4
      %s231 = scalar_lea.vmem %s3, %s230
      %p232 = scmp.lt.s32.totalorder %s19, 1
      %s233 = scalar_select %p232, %s19, 1
      %p234 = scmp.lt.s32.totalorder %s20, 0
      %s235 = scalar_select %p234, %s20, 0
      %s236 = sadd.s32 %s235, %s233
      %s237 = smul.addr %s236, 4
      %s238 = scalar_lea.vmem %s0, %s237
      %p239 = scmp.lt.s32.totalorder %s19, 1
      %s240 = scalar_select %p239, %s19, 1
      %p241 = scmp.lt.s32.totalorder %s21, 0
      %s242 = scalar_select %p241, %s21, 0
      %s243 = sadd.s32 %s242, %s240
      %s244 = smul.addr %s243, 4
      %s245 = scalar_lea.vmem %s1, %s244
      %p246 = scmp.lt.s32.totalorder %s19, 1
      %s247 = scalar_select %p246, %s19, 1
      %p248 = scmp.lt.s32.totalorder %s21, 0
      %s249 = scalar_select %p248, %s21, 0
      %s250 = sadd.s32 %s249, %s247
      %s251 = smul.addr %s250, 4
      %s252 = scalar_lea.vmem %s2, %s251
      %p253 = scmp.lt.s32.totalorder %s19, 1
      %s254 = scalar_select %p253, %s19, 1
      %p255 = scmp.lt.s32.totalorder %s20, 0
      %s256 = scalar_select %p255, %s20, 0
      %s257 = sadd.s32 %s256, %s254
      %s258 = smul.addr %s257, 4
      %s259 = scalar_lea.vmem %s3, %s258
      %p261 = scmp.eq.s32.totalorder %s21, 0
      // Predicated region
      $region33: #{_lambda_.4} parent=31 // pred_check
        %p262 = pneg %p261
      $region34: #{_lambda_.4} parent=31 // pred_check_branch
        %264 = sbr.rel (%p262) target = $region36
      $region35: #{_lambda_.4} parent=31 // pred_region
        %vm265 = vcmask 7168
        %266 = vst.msk [vmem:[#allocation2] sm:$0xff] %vm265, -inf
        %267 = vst.msk [vmem:[#allocation2 + $0x8] sm:$0xff] %vm265, -inf
        %268 = vst.msk [vmem:[#allocation2 + $0x10] sm:$0xff] %vm265, -inf
        %269 = vst.msk [vmem:[#allocation2 + $0x18] sm:$0xff] %vm265, -inf
        %270 = vst.msk [vmem:[#allocation3] sm:$0xff] %vm265, 0.0
        %271 = vst.msk [vmem:[#allocation3 + $0x8] sm:$0xff] %vm265, 0.0
        %272 = vst.msk [vmem:[#allocation3 + $0x10] sm:$0xff] %vm265, 0.0
        %273 = vst.msk [vmem:[#allocation3 + $0x18] sm:$0xff] %vm265, 0.0
        %vm274 = vcmask 64512
        %275 = vst.msk [vmem:[#allocation4] sm:$0xff] %vm274, 0.0
        %276 = vst.msk [vmem:[#allocation4 + $0x8] sm:$0xff] %vm274, 0.0
        %277 = vst.msk [vmem:[#allocation4 + $0x10] sm:$0xff] %vm274, 0.0
        %278 = vst.msk [vmem:[#allocation4 + $0x18] sm:$0xff] %vm274, 0.0
      $region36: #{_lambda_.4} parent=31 // pred_fallthru
        _
      %v279 = vld [vmem:[%s238] sm:$0xf]
      %v280 = vld [vmem:[%s245] sm:$0xf]
      %v281 = vld [vmem:[%s252] sm:$0xf]
      %vm282 = vcmask 64512
      %v284 = vsel %vm282, %v279, 0
      %v287 = vsel %vm282, %v280, 0
      %289 = vmatprep.subr.bf16.mxu0 0
      %290 = vmatpush1.bf16.xpose.msra.mxu0 0
      %291 = vmatprep.subr.bf16.mxu0 0
      %292 = vmatpush1.bf16.xpose.msra.mxu0 0
      %293 = vmatprep.subr.bf16.mxu0 0
      %294 = vmatpush1.bf16.xpose.msra.mxu0 0
      %295 = vmatprep.subr.bf16.mxu0 0
      %296 = vmatpush1.bf16.xpose.msra.mxu0 0
      %297 = vmatprep.subr.bf16.mxu0 0
      %298 = vmatpush1.bf16.xpose.msra.mxu0 0
      %299 = vmatprep.subr.bf16.mxu0 0
      %300 = vmatpush1.bf16.xpose.msra.mxu0 0
      %301 = vmatprep.subr.bf16.mxu0 0
      %302 = vmatpush1.bf16.xpose.msra.mxu0 0
      %303 = vmatprep.subr.bf16.mxu0 0
      %304 = vmatpush1.bf16.xpose.msra.mxu0 %v287
      %305 = vmatprep.subr.bf16.mxu0 0
      %306 = vmatpush2.bf16.xpose.msra.mxu0 0
      %307 = vmatprep.subr.bf16.mxu0 0
      %308 = vmatpush2.bf16.xpose.msra.mxu0 0
      %309 = vmatprep.subr.bf16.mxu0 0
      %310 = vmatpush2.bf16.xpose.msra.mxu0 0
      %311 = vmatprep.subr.bf16.mxu0 0
      %312 = vmatpush2.bf16.xpose.msra.mxu0 0
      %313 = vmatprep.subr.bf16.mxu0 0
      %314 = vmatpush2.bf16.xpose.msra.mxu0 0
      %315 = vmatprep.subr.bf16.mxu0 0
      %316 = vmatpush2.bf16.xpose.msra.mxu0 0
      %317 = vmatprep.subr.bf16.mxu0 0
      %318 = vmatpush2.bf16.xpose.msra.mxu0 0
      %319 = vmatprep.subr.bf16.mxu0 0
      %320 = vmatpush2.bf16.xpose.msra.mxu0 0
      %321 = vmatprep.mubr.bf16.mxu0 0
      %322 = vmatmul.mubr.bf16.gmra.mxu0 %v284
      %v323 = vpop.f32.mrf.mxu0
      %v324 = vadd.f32 0.0, %v323
      %v325 = vpop.f32.mrf.mxu0
      %v326 = vpop.f32.mrf.mxu0
      %v327 = vpop.f32.mrf.mxu0
      %328 = vdwg.mxu0
      %v329 = vld [vmem:[#allocation2] sm:$0xff]
      %v330 = vsel %vm282, %v324, -inf
      %331 = vmax.xlane.f32.xlu0 %v330
      %v332 = vpop.xlane.xlu0 %331
      %v333 = vmax.f32 %v329, %v332
      %v334 = vsub.f32 %v329, %v333
      %v335 = vmul.f32 %v334, 1.442695
      %v336 = vpow.pop %v335
      %338 = vset.pattern.permute.xlu0 0
      %339 = vperm.xlu0 %338, %v333
      %v340 = vpop.permute.xlu0 %339
      %v342 = vsub.f32 %v324, %v340
      %v343 = vmul.f32 %v342, 1.442695
      %v344 = vpow.pop %v343
      %v345 = vld [vmem:[#allocation3] sm:$0xff]
      %v346 = vmul.f32 %v336, %v345
      %v347 = vsel %vm282, %v344, 0.0
      %348 = vadd.xlane.f32.xlu0 %v347
      %v349 = vpop.xlane.xlu0 %348
      %v350 = vadd.f32 %v346, %v349
      %vm351 = vcmask 7168
      %352 = vst.msk [vmem:[#allocation3] sm:$0xff] %vm351, %v350
      %v353 = vld [vmem:[#allocation4] sm:$0xff]
      %355 = vset.pattern.permute.xlu0 0
      %356 = vperm.xlu0 %355, %v336
      %v357 = vpop.permute.xlu0 %356
      %v359 = vmul.f32 %v357, %v353
      %v360 = vpack.c.bf16 %v344, %v344
      %v362 = vsel %vm282, %v360, 0
      %vm364 = vcmask 1043456
      %v366 = vsel %vm364, %v281, 0
      %368 = vmatprep.subr.bf16.mxu0 0
      %369 = vmatpush1.bf16.msra.mxu0 0
      %370 = vmatprep.subr.bf16.mxu0 0
      %371 = vmatpush1.bf16.msra.mxu0 0
      %372 = vmatprep.subr.bf16.mxu0 0
      %373 = vmatpush1.bf16.msra.mxu0 0
      %374 = vmatprep.subr.bf16.mxu0 0
      %375 = vmatpush1.bf16.msra.mxu0 0
      %376 = vmatprep.subr.bf16.mxu0 0
      %377 = vmatpush1.bf16.msra.mxu0 0
      %378 = vmatprep.subr.bf16.mxu0 0
      %379 = vmatpush1.bf16.msra.mxu0 0
      %380 = vmatprep.subr.bf16.mxu0 0
      %381 = vmatpush1.bf16.msra.mxu0 0
      %382 = vmatprep.subr.bf16.mxu0 0
      %383 = vmatpush1.bf16.msra.mxu0 %v366
      %384 = vmatprep.subr.bf16.mxu0 0
      %385 = vmatpush2.bf16.msra.mxu0 0
      %386 = vmatprep.subr.bf16.mxu0 0
      %387 = vmatpush2.bf16.msra.mxu0 0
      %388 = vmatprep.subr.bf16.mxu0 0
      %389 = vmatpush2.bf16.msra.mxu0 0
      %390 = vmatprep.subr.bf16.mxu0 0
      %391 = vmatpush2.bf16.msra.mxu0 0
      %392 = vmatprep.subr.bf16.mxu0 0
      %393 = vmatpush2.bf16.msra.mxu0 0
      %394 = vmatprep.subr.bf16.mxu0 0
      %395 = vmatpush2.bf16.msra.mxu0 0
      %396 = vmatprep.subr.bf16.mxu0 0
      %397 = vmatpush2.bf16.msra.mxu0 0
      %398 = vmatprep.subr.bf16.mxu0 0
      %399 = vmatpush2.bf16.msra.mxu0 0
      %400 = vmatprep.mubr.bf16.mxu0 0
      %401 = vmatmul.mubr.bf16.gmra.mxu0 %v362
      %v402 = vpop.f32.mrf.mxu0
      %v403 = vadd.f32 0.0, %v402
      %v404 = vpop.f32.mrf.mxu0
      %v405 = vpop.f32.mrf.mxu0
      %v406 = vpop.f32.mrf.mxu0
      %407 = vdwg.mxu0
      %v408 = vadd.f32 %v359, %v403
      %409 = vst.msk [vmem:[#allocation4] sm:$0xff] %vm282, %v408
      %410 = vst.msk [vmem:[#allocation2] sm:$0xff] %vm351, %v333
      %v412 = vunpack.c.l.b16 %v279
      %v413 = vpack.c.b16 %v412, %v412
      %414 = vrot.lane.b32.xlu0 %v413, 120
      %v415 = vpop.permute.xlu0 %414
      %v417 = vunpack.c.l.b16 %v280
      %v418 = vpack.c.b16 %v417, %v417
      %419 = vrot.lane.b32.xlu0 %v418, 120
      %v420 = vpop.permute.xlu0 %419
      %v422 = vsel %vm282, %v415, 0
      %v425 = vsel %vm282, %v420, 0
      %427 = vmatprep.subr.bf16.mxu0 0
      %428 = vmatpush1.bf16.xpose.msra.mxu0 0
      %429 = vmatprep.subr.bf16.mxu0 0
      %430 = vmatpush1.bf16.xpose.msra.mxu0 0
      %431 = vmatprep.subr.bf16.mxu0 0
      %432 = vmatpush1.bf16.xpose.msra.mxu0 0
      %433 = vmatprep.subr.bf16.mxu0 0
      %434 = vmatpush1.bf16.xpose.msra.mxu0 0
      %435 = vmatprep.subr.bf16.mxu0 0
      %436 = vmatpush1.bf16.xpose.msra.mxu0 0
      %437 = vmatprep.subr.bf16.mxu0 0
      %438 = vmatpush1.bf16.xpose.msra.mxu0 0
      %439 = vmatprep.subr.bf16.mxu0 0
      %440 = vmatpush1.bf16.xpose.msra.mxu0 0
      %441 = vmatprep.subr.bf16.mxu0 0
      %442 = vmatpush1.bf16.xpose.msra.mxu0 %v425
      %443 = vmatprep.subr.bf16.mxu0 0
      %444 = vmatpush2.bf16.xpose.msra.mxu0 0
      %445 = vmatprep.subr.bf16.mxu0 0
      %446 = vmatpush2.bf16.xpose.msra.mxu0 0
      %447 = vmatprep.subr.bf16.mxu0 0
      %448 = vmatpush2.bf16.xpose.msra.mxu0 0
      %449 = vmatprep.subr.bf16.mxu0 0
      %450 = vmatpush2.bf16.xpose.msra.mxu0 0
      %451 = vmatprep.subr.bf16.mxu0 0
      %452 = vmatpush2.bf16.xpose.msra.mxu0 0
      %453 = vmatprep.subr.bf16.mxu0 0
      %454 = vmatpush2.bf16.xpose.msra.mxu0 0
      %455 = vmatprep.subr.bf16.mxu0 0
      %456 = vmatpush2.bf16.xpose.msra.mxu0 0
      %457 = vmatprep.subr.bf16.mxu0 0
      %458 = vmatpush2.bf16.xpose.msra.mxu0 0
      %459 = vmatprep.mubr.bf16.mxu0 0
      %460 = vmatmul.mubr.bf16.gmra.mxu0 %v422
      %v461 = vpop.f32.mrf.mxu0
      %v462 = vadd.f32 0.0, %v461
      %v463 = vpop.f32.mrf.mxu0
      %v464 = vpop.f32.mrf.mxu0
      %v465 = vpop.f32.mrf.mxu0
      %466 = vdwg.mxu0
      %s467 = scalar_lea.vmem [#allocation2], 8
      %v468 = vld [vmem:[%s467] sm:$0xff]
      %v469 = vsel %vm282, %v462, -inf
      %470 = vmax.xlane.f32.xlu0 %v469
      %v471 = vpop.xlane.xlu0 %470
      %v472 = vmax.f32 %v468, %v471
      %v473 = vsub.f32 %v468, %v472
      %v474 = vmul.f32 %v473, 1.442695
      %v475 = vpow.pop %v474
      %477 = vset.pattern.permute.xlu0 0
      %478 = vperm.xlu0 %477, %v472
      %v479 = vpop.permute.xlu0 %478
      %v481 = vsub.f32 %v462, %v479
      %v482 = vmul.f32 %v481, 1.442695
      %v483 = vpow.pop %v482
      %s484 = scalar_lea.vmem [#allocation3], 8
      %v485 = vld [vmem:[%s484] sm:$0xff]
      %v486 = vmul.f32 %v475, %v485
      %v487 = vsel %vm282, %v483, 0.0
      %488 = vadd.xlane.f32.xlu0 %v487
      %v489 = vpop.xlane.xlu0 %488
      %v490 = vadd.f32 %v486, %v489
      %491 = vst.msk [vmem:[%s484] sm:$0xff] %vm351, %v490
      %s492 = scalar_lea.vmem [#allocation4], 8
      %v493 = vld [vmem:[%s492] sm:$0xff]
      %495 = vset.pattern.permute.xlu0 0
      %496 = vperm.xlu0 %495, %v475
      %v497 = vpop.permute.xlu0 %496
      %v499 = vmul.f32 %v497, %v493
      %v500 = vpack.c.bf16 %v483, %v483
      %v502 = vunpack.c.l.b16 %v281
      %v503 = vpack.c.b16 %v502, %v502
      %504 = vrot.lane.b32.xlu0 %v503, 120
      %v505 = vpop.permute.xlu0 %504
      %v507 = vsel %vm282, %v500, 0
      %v510 = vsel %vm364, %v505, 0
      %512 = vmatprep.subr.bf16.mxu0 0
      %513 = vmatpush1.bf16.msra.mxu0 0
      %514 = vmatprep.subr.bf16.mxu0 0
      %515 = vmatpush1.bf16.msra.mxu0 0
      %516 = vmatprep.subr.bf16.mxu0 0
      %517 = vmatpush1.bf16.msra.mxu0 0
      %518 = vmatprep.subr.bf16.mxu0 0
      %519 = vmatpush1.bf16.msra.mxu0 0
      %520 = vmatprep.subr.bf16.mxu0 0
      %521 = vmatpush1.bf16.msra.mxu0 0
      %522 = vmatprep.subr.bf16.mxu0 0
      %523 = vmatpush1.bf16.msra.mxu0 0
      %524 = vmatprep.subr.bf16.mxu0 0
      %525 = vmatpush1.bf16.msra.mxu0 0
      %526 = vmatprep.subr.bf16.mxu0 0
      %527 = vmatpush1.bf16.msra.mxu0 %v510
      %528 = vmatprep.subr.bf16.mxu0 0
      %529 = vmatpush2.bf16.msra.mxu0 0
      %530 = vmatprep.subr.bf16.mxu0 0
      %531 = vmatpush2.bf16.msra.mxu0 0
      %532 = vmatprep.subr.bf16.mxu0 0
      %533 = vmatpush2.bf16.msra.mxu0 0
      %534 = vmatprep.subr.bf16.mxu0 0
      %535 = vmatpush2.bf16.msra.mxu0 0
      %536 = vmatprep.subr.bf16.mxu0 0
      %537 = vmatpush2.bf16.msra.mxu0 0
      %538 = vmatprep.subr.bf16.mxu0 0
      %539 = vmatpush2.bf16.msra.mxu0 0
      %540 = vmatprep.subr.bf16.mxu0 0
      %541 = vmatpush2.bf16.msra.mxu0 0
      %542 = vmatprep.subr.bf16.mxu0 0
      %543 = vmatpush2.bf16.msra.mxu0 0
      %544 = vmatprep.mubr.bf16.mxu0 0
      %545 = vmatmul.mubr.bf16.gmra.mxu0 %v507
      %v546 = vpop.f32.mrf.mxu0
      %v547 = vadd.f32 0.0, %v546
      %v548 = vpop.f32.mrf.mxu0
      %v549 = vpop.f32.mrf.mxu0
      %v550 = vpop.f32.mrf.mxu0
      %551 = vdwg.mxu0
      %v552 = vadd.f32 %v499, %v547
      %553 = vst.msk [vmem:[%s492] sm:$0xff] %vm282, %v552
      %554 = vst.msk [vmem:[%s467] sm:$0xff] %vm351, %v472
      %555 = vrot.lane.b32.xlu0 %v413, 112
      %v556 = vpop.permute.xlu0 %555
      %557 = vrot.lane.b32.xlu0 %v418, 112
      %v558 = vpop.permute.xlu0 %557
      %v560 = vsel %vm282, %v556, 0
      %v563 = vsel %vm282, %v558, 0
      %565 = vmatprep.subr.bf16.mxu0 0
      %566 = vmatpush1.bf16.xpose.msra.mxu0 0
      %567 = vmatprep.subr.bf16.mxu0 0
      %568 = vmatpush1.bf16.xpose.msra.mxu0 0
      %569 = vmatprep.subr.bf16.mxu0 0
      %570 = vmatpush1.bf16.xpose.msra.mxu0 0
      %571 = vmatprep.subr.bf16.mxu0 0
      %572 = vmatpush1.bf16.xpose.msra.mxu0 0
      %573 = vmatprep.subr.bf16.mxu0 0
      %574 = vmatpush1.bf16.xpose.msra.mxu0 0
      %575 = vmatprep.subr.bf16.mxu0 0
      %576 = vmatpush1.bf16.xpose.msra.mxu0 0
      %577 = vmatprep.subr.bf16.mxu0 0
      %578 = vmatpush1.bf16.xpose.msra.mxu0 0
      %579 = vmatprep.subr.bf16.mxu0 0
      %580 = vmatpush1.bf16.xpose.msra.mxu0 %v563
      %581 = vmatprep.subr.bf16.mxu0 0
      %582 = vmatpush2.bf16.xpose.msra.mxu0 0
      %583 = vmatprep.subr.bf16.mxu0 0
      %584 = vmatpush2.bf16.xpose.msra.mxu0 0
      %585 = vmatprep.subr.bf16.mxu0 0
      %586 = vmatpush2.bf16.xpose.msra.mxu0 0
      %587 = vmatprep.subr.bf16.mxu0 0
      %588 = vmatpush2.bf16.xpose.msra.mxu0 0
      %589 = vmatprep.subr.bf16.mxu0 0
      %590 = vmatpush2.bf16.xpose.msra.mxu0 0
      %591 = vmatprep.subr.bf16.mxu0 0
      %592 = vmatpush2.bf16.xpose.msra.mxu0 0
      %593 = vmatprep.subr.bf16.mxu0 0
      %594 = vmatpush2.bf16.xpose.msra.mxu0 0
      %595 = vmatprep.subr.bf16.mxu0 0
      %596 = vmatpush2.bf16.xpose.msra.mxu0 0
      %597 = vmatprep.mubr.bf16.mxu0 0
      %598 = vmatmul.mubr.bf16.gmra.mxu0 %v560
      %v599 = vpop.f32.mrf.mxu0
      %v600 = vadd.f32 0.0, %v599
      %v601 = vpop.f32.mrf.mxu0
      %v602 = vpop.f32.mrf.mxu0
      %v603 = vpop.f32.mrf.mxu0
      %604 = vdwg.mxu0
      %s605 = scalar_lea.vmem [#allocation2], 16
      %v606 = vld [vmem:[%s605] sm:$0xff]
      %v607 = vsel %vm282, %v600, -inf
      %608 = vmax.xlane.f32.xlu0 %v607
      %v609 = vpop.xlane.xlu0 %608
      %v610 = vmax.f32 %v606, %v609
      %v611 = vsub.f32 %v606, %v610
      %v612 = vmul.f32 %v611, 1.442695
      %v613 = vpow.pop %v612
      %615 = vset.pattern.permute.xlu0 0
      %616 = vperm.xlu0 %615, %v610
      %v617 = vpop.permute.xlu0 %616
      %v619 = vsub.f32 %v600, %v617
      %v620 = vmul.f32 %v619, 1.442695
      %v621 = vpow.pop %v620
      %s622 = scalar_lea.vmem [#allocation3], 16
      %v623 = vld [vmem:[%s622] sm:$0xff]
      %v624 = vmul.f32 %v613, %v623
      %v625 = vsel %vm282, %v621, 0.0
      %626 = vadd.xlane.f32.xlu0 %v625
      %v627 = vpop.xlane.xlu0 %626
      %v628 = vadd.f32 %v624, %v627
      %629 = vst.msk [vmem:[%s622] sm:$0xff] %vm351, %v628
      %s630 = scalar_lea.vmem [#allocation4], 16
      %v631 = vld [vmem:[%s630] sm:$0xff]
      %633 = vset.pattern.permute.xlu0 0
      %634 = vperm.xlu0 %633, %v613
      %v635 = vpop.permute.xlu0 %634
      %v637 = vmul.f32 %v635, %v631
      %v638 = vpack.c.bf16 %v621, %v621
      %639 = vrot.lane.b32.xlu0 %v503, 112
      %v640 = vpop.permute.xlu0 %639
      %v642 = vsel %vm282, %v638, 0
      %v645 = vsel %vm364, %v640, 0
      %647 = vmatprep.subr.bf16.mxu0 0
      %648 = vmatpush1.bf16.msra.mxu0 0
      %649 = vmatprep.subr.bf16.mxu0 0
      %650 = vmatpush1.bf16.msra.mxu0 0
      %651 = vmatprep.subr.bf16.mxu0 0
      %652 = vmatpush1.bf16.msra.mxu0 0
      %653 = vmatprep.subr.bf16.mxu0 0
      %654 = vmatpush1.bf16.msra.mxu0 0
      %655 = vmatprep.subr.bf16.mxu0 0
      %656 = vmatpush1.bf16.msra.mxu0 0
      %657 = vmatprep.subr.bf16.mxu0 0
      %658 = vmatpush1.bf16.msra.mxu0 0
      %659 = vmatprep.subr.bf16.mxu0 0
      %660 = vmatpush1.bf16.msra.mxu0 0
      %661 = vmatprep.subr.bf16.mxu0 0
      %662 = vmatpush1.bf16.msra.mxu0 %v645
      %663 = vmatprep.subr.bf16.mxu0 0
      %664 = vmatpush2.bf16.msra.mxu0 0
      %665 = vmatprep.subr.bf16.mxu0 0
      %666 = vmatpush2.bf16.msra.mxu0 0
      %667 = vmatprep.subr.bf16.mxu0 0
      %668 = vmatpush2.bf16.msra.mxu0 0
      %669 = vmatprep.subr.bf16.mxu0 0
      %670 = vmatpush2.bf16.msra.mxu0 0
      %671 = vmatprep.subr.bf16.mxu0 0
      %672 = vmatpush2.bf16.msra.mxu0 0
      %673 = vmatprep.subr.bf16.mxu0 0
      %674 = vmatpush2.bf16.msra.mxu0 0
      %675 = vmatprep.subr.bf16.mxu0 0
      %676 = vmatpush2.bf16.msra.mxu0 0
      %677 = vmatprep.subr.bf16.mxu0 0
      %678 = vmatpush2.bf16.msra.mxu0 0
      %679 = vmatprep.mubr.bf16.mxu0 0
      %680 = vmatmul.mubr.bf16.gmra.mxu0 %v642
      %v681 = vpop.f32.mrf.mxu0
      %v682 = vadd.f32 0.0, %v681
      %v683 = vpop.f32.mrf.mxu0
      %v684 = vpop.f32.mrf.mxu0
      %v685 = vpop.f32.mrf.mxu0
      %686 = vdwg.mxu0
      %v687 = vadd.f32 %v637, %v682
      %688 = vst.msk [vmem:[%s630] sm:$0xff] %vm282, %v687
      %689 = vst.msk [vmem:[%s605] sm:$0xff] %vm351, %v610
      %690 = vrot.lane.b32.xlu0 %v413, 104
      %v691 = vpop.permute.xlu0 %690
      %692 = vrot.lane.b32.xlu0 %v418, 104
      %v693 = vpop.permute.xlu0 %692
      %v695 = vsel %vm282, %v691, 0
      %v698 = vsel %vm282, %v693, 0
      %700 = vmatprep.subr.bf16.mxu0 0
      %701 = vmatpush1.bf16.xpose.msra.mxu0 0
      %702 = vmatprep.subr.bf16.mxu0 0
      %703 = vmatpush1.bf16.xpose.msra.mxu0 0
      %704 = vmatprep.subr.bf16.mxu0 0
      %705 = vmatpush1.bf16.xpose.msra.mxu0 0
      %706 = vmatprep.subr.bf16.mxu0 0
      %707 = vmatpush1.bf16.xpose.msra.mxu0 0
      %708 = vmatprep.subr.bf16.mxu0 0
      %709 = vmatpush1.bf16.xpose.msra.mxu0 0
      %710 = vmatprep.subr.bf16.mxu0 0
      %711 = vmatpush1.bf16.xpose.msra.mxu0 0
      %712 = vmatprep.subr.bf16.mxu0 0
      %713 = vmatpush1.bf16.xpose.msra.mxu0 0
      %714 = vmatprep.subr.bf16.mxu0 0
      %715 = vmatpush1.bf16.xpose.msra.mxu0 %v698
      %716 = vmatprep.subr.bf16.mxu0 0
      %717 = vmatpush2.bf16.xpose.msra.mxu0 0
      %718 = vmatprep.subr.bf16.mxu0 0
      %719 = vmatpush2.bf16.xpose.msra.mxu0 0
      %720 = vmatprep.subr.bf16.mxu0 0
      %721 = vmatpush2.bf16.xpose.msra.mxu0 0
      %722 = vmatprep.subr.bf16.mxu0 0
      %723 = vmatpush2.bf16.xpose.msra.mxu0 0
      %724 = vmatprep.subr.bf16.mxu0 0
      %725 = vmatpush2.bf16.xpose.msra.mxu0 0
      %726 = vmatprep.subr.bf16.mxu0 0
      %727 = vmatpush2.bf16.xpose.msra.mxu0 0
      %728 = vmatprep.subr.bf16.mxu0 0
      %729 = vmatpush2.bf16.xpose.msra.mxu0 0
      %730 = vmatprep.subr.bf16.mxu0 0
      %731 = vmatpush2.bf16.xpose.msra.mxu0 0
      %732 = vmatprep.mubr.bf16.mxu0 0
      %733 = vmatmul.mubr.bf16.gmra.mxu0 %v695
      %v734 = vpop.f32.mrf.mxu0
      %v735 = vadd.f32 0.0, %v734
      %v736 = vpop.f32.mrf.mxu0
      %v737 = vpop.f32.mrf.mxu0
      %v738 = vpop.f32.mrf.mxu0
      %739 = vdwg.mxu0
      %s740 = scalar_lea.vmem [#allocation2], 24
      %v741 = vld [vmem:[%s740] sm:$0xff]
      %v742 = vsel %vm282, %v735, -inf
      %743 = vmax.xlane.f32.xlu0 %v742
      %v744 = vpop.xlane.xlu0 %743
      %v745 = vmax.f32 %v741, %v744
      %v746 = vsub.f32 %v741, %v745
      %v747 = vmul.f32 %v746, 1.442695
      %v748 = vpow.pop %v747
      %750 = vset.pattern.permute.xlu0 0
      %751 = vperm.xlu0 %750, %v745
      %v752 = vpop.permute.xlu0 %751
      %v754 = vsub.f32 %v735, %v752
      %v755 = vmul.f32 %v754, 1.442695
      %v756 = vpow.pop %v755
      %s757 = scalar_lea.vmem [#allocation3], 24
      %v758 = vld [vmem:[%s757] sm:$0xff]
      %v759 = vmul.f32 %v748, %v758
      %v760 = vsel %vm282, %v756, 0.0
      %761 = vadd.xlane.f32.xlu0 %v760
      %v762 = vpop.xlane.xlu0 %761
      %v763 = vadd.f32 %v759, %v762
      %764 = vst.msk [vmem:[%s757] sm:$0xff] %vm351, %v763
      %s765 = scalar_lea.vmem [#allocation4], 24
      %v766 = vld [vmem:[%s765] sm:$0xff]
      %768 = vset.pattern.permute.xlu0 0
      %769 = vperm.xlu0 %768, %v748
      %v770 = vpop.permute.xlu0 %769
      %v772 = vmul.f32 %v770, %v766
      %v773 = vpack.c.bf16 %v756, %v756
      %774 = vrot.lane.b32.xlu0 %v503, 104
      %v775 = vpop.permute.xlu0 %774
      %v777 = vsel %vm282, %v773, 0
      %v780 = vsel %vm364, %v775, 0
      %782 = vmatprep.subr.bf16.mxu0 0
      %783 = vmatpush1.bf16.msra.mxu0 0
      %784 = vmatprep.subr.bf16.mxu0 0
      %785 = vmatpush1.bf16.msra.mxu0 0
      %786 = vmatprep.subr.bf16.mxu0 0
      %787 = vmatpush1.bf16.msra.mxu0 0
      %788 = vmatprep.subr.bf16.mxu0 0
      %789 = vmatpush1.bf16.msra.mxu0 0
      %790 = vmatprep.subr.bf16.mxu0 0
      %791 = vmatpush1.bf16.msra.mxu0 0
      %792 = vmatprep.subr.bf16.mxu0 0
      %793 = vmatpush1.bf16.msra.mxu0 0
      %794 = vmatprep.subr.bf16.mxu0 0
      %795 = vmatpush1.bf16.msra.mxu0 0
      %796 = vmatprep.subr.bf16.mxu0 0
      %797 = vmatpush1.bf16.msra.mxu0 %v780
      %798 = vmatprep.subr.bf16.mxu0 0
      %799 = vmatpush2.bf16.msra.mxu0 0
      %800 = vmatprep.subr.bf16.mxu0 0
      %801 = vmatpush2.bf16.msra.mxu0 0
      %802 = vmatprep.subr.bf16.mxu0 0
      %803 = vmatpush2.bf16.msra.mxu0 0
      %804 = vmatprep.subr.bf16.mxu0 0
      %805 = vmatpush2.bf16.msra.mxu0 0
      %806 = vmatprep.subr.bf16.mxu0 0
      %807 = vmatpush2.bf16.msra.mxu0 0
      %808 = vmatprep.subr.bf16.mxu0 0
      %809 = vmatpush2.bf16.msra.mxu0 0
      %810 = vmatprep.subr.bf16.mxu0 0
      %811 = vmatpush2.bf16.msra.mxu0 0
      %812 = vmatprep.subr.bf16.mxu0 0
      %813 = vmatpush2.bf16.msra.mxu0 0
      %814 = vmatprep.mubr.bf16.mxu0 0
      %815 = vmatmul.mubr.bf16.gmra.mxu0 %v777
      %v816 = vpop.f32.mrf.mxu0
      %v817 = vadd.f32 0.0, %v816
      %v818 = vpop.f32.mrf.mxu0
      %v819 = vpop.f32.mrf.mxu0
      %v820 = vpop.f32.mrf.mxu0
      %821 = vdwg.mxu0
      %v822 = vadd.f32 %v772, %v817
      %823 = vst.msk [vmem:[%s765] sm:$0xff] %vm282, %v822
      %824 = vst.msk [vmem:[%s740] sm:$0xff] %vm351, %v745
      // Predicated region
      $region37: #{_lambda_.4} parent=31 // pred_check
        %p825 = pneg %p261
      $region38: #{_lambda_.4} parent=31 // pred_check_branch
        %827 = sbr.rel (%p825) target = $region40
      $region39: #{_lambda_.4} parent=31 // pred_region
        %v828 = vld [vmem:[#allocation3] sm:$0xff]
        %v829 = vrcp.pop %v828
        %v830 = vld [vmem:[#allocation4] sm:$0xff]
        %832 = vset.pattern.permute.xlu0 0
        %833 = vperm.xlu0 %832, %v829
        %v834 = vpop.permute.xlu0 %833
        %v836 = vmul.f32 %v830, %v834
        %v837 = vpack.c.bf16 %v836, %v836
        %vm838 = vcmask 60416
        %839 = vst.msk [vmem:[%s259] sm:$0xf] %vm838, %v837
        %v840 = vld [vmem:[%s484] sm:$0xff]
        %v841 = vrcp.pop %v840
        %v842 = vld [vmem:[%s492] sm:$0xff]
        %844 = vset.pattern.permute.xlu0 0
        %845 = vperm.xlu0 %844, %v841
        %v846 = vpop.permute.xlu0 %845
        %v848 = vmul.f32 %v842, %v846
        %v849 = vpack.c.bf16 %v848, %v848
        %v851 = vunpack.c.l.b16 %v849
        %v852 = vpack.c.b16 %v851, %v851
        %853 = vrot.lane.b32.xlu0 %v852, 8
        %v854 = vpop.permute.xlu0 %853
        %vm856 = vcmask 126016
        %857 = vst.msk [vmem:[%s259] sm:$0xf] %vm856, %v854
        %v858 = vld [vmem:[%s622] sm:$0xff]
        %v859 = vrcp.pop %v858
        %v860 = vld [vmem:[%s630] sm:$0xff]
        %862 = vset.pattern.permute.xlu0 0
        %863 = vperm.xlu0 %862, %v859
        %v864 = vpop.permute.xlu0 %863
        %v866 = vmul.f32 %v860, %v864
        %v867 = vpack.c.bf16 %v866, %v866
        %v869 = vunpack.c.l.b16 %v867
        %v870 = vpack.c.b16 %v869, %v869
        %871 = vrot.lane.b32.xlu0 %v870, 16
        %v872 = vpop.permute.xlu0 %871
        %vm874 = vcmask 191616
        %875 = vst.msk [vmem:[%s259] sm:$0xf] %vm874, %v872
        %v876 = vld [vmem:[%s757] sm:$0xff]
        %v877 = vrcp.pop %v876
        %v878 = vld [vmem:[%s765] sm:$0xff]
        %880 = vset.pattern.permute.xlu0 0
        %881 = vperm.xlu0 %880, %v877
        %v882 = vpop.permute.xlu0 %881
        %v884 = vmul.f32 %v878, %v882
        %v885 = vpack.c.bf16 %v884, %v884
        %v887 = vunpack.c.l.b16 %v885
        %v888 = vpack.c.b16 %v887, %v887
        %889 = vrot.lane.b32.xlu0 %v888, 24
        %v890 = vpop.permute.xlu0 %889
        %vm892 = vcmask 257216
        %893 = vst.msk [vmem:[%s259] sm:$0xf] %vm892, %v890
      $region40: #{_lambda_.4} parent=31 // pred_fallthru
        _
      %p894 = scmp.lt.s32.totalorder %s19, 1
      %s895 = scalar_select %p894, %s19, 1
      %p896 = scmp.lt.s32.totalorder %s20, 0
      %s897 = scalar_select %p896, %s20, 0
      %s898 = sadd.s32 %s897, %s895
      %s899 = smul.addr %s898, 4
      %s900 = scalar_lea.vmem %s3, %s899
      // Predicated region
      $region41: #{_lambda_.4} parent=31 // pred_check
        %p901 = pneg %p137
      $region42: #{_lambda_.4} parent=31 // pred_check_branch
        %903 = sbr.rel (%p901) target = $region44
      $region43: #{_lambda_.4} parent=31 // pred_region
        _
      $region44: #{_lambda_.4} parent=31 // pred_fallthru
        _
    $region32: #{_lambda_.4} parent=5 // pred_fallthru
      _
    %p904 = scmp.le.s32.totalorder 2, %s9
    // Predicated region
    $region45: #{_lambda_.4} parent=5 // pred_check
      %p905 = pneg %p904
    $region46: #{_lambda_.4} parent=5 // pred_check_branch
      %907 = sbr.rel (%p905) target = $region48
    $region47: #{_lambda_.4} parent=5 // pred_region
      %s908 = ssub.s32 %s9, 2
      // Predicated region
      $region49: #{_lambda_.4} parent=47 // pred_check
        %p909 = pneg %p143
      $region50: #{_lambda_.4} parent=47 // pred_check_branch
        %911 = sbr.rel (%p909) target = $region52
      $region51: #{_lambda_.4} parent=47 // pred_region
        %p912 = scmp.lt.s32.totalorder %s22, 1
        %s913 = scalar_select %p912, %s22, 1
        %p914 = scmp.lt.s32.totalorder %s23, 0
        %s915 = scalar_select %p914, %s23, 0
        %s916 = sadd.s32 %s915, %s913
        %s917 = smul.addr %s916, 4
        %s918 = scalar_lea.vmem %s3, %s917
      $region52: #{_lambda_.4} parent=47 // pred_fallthru
        _
    $region48: #{_lambda_.4} parent=5 // pred_fallthru
      _
  $region6: #{_lambda_.4} parent=0 // loop_footer
    %s13 = sadd.s32 1, %s9
  $region7: #{_lambda_.4} parent=0 // loop_footer_branch
    %8 = sbr.rel target = $region3
  $region8: #{_lambda_.4} parent=0 // loop_exit
    _

</llo_original>
